<compile_context>
chip_gen: v7x
topology: tpu7x:2x2x1
jax: 0.10.0
libtpu: 0.0.40
codegen_flags: <defaults>
</compile_context>

<pallas_src>
import numpy as np
import jax
import jax.numpy as jnp
from jax.experimental import pallas as pl
from jax.experimental.pallas import tpu as pltpu

# ---- static problem sizes (small, consistent with the module) ----
N, K, D = 4, 8, 8          # args.N mixture components, args.K samples each, args.dim
H = 16                      # hidden width of the RealNVP s/t networks
L = 2                       # args.n_layer_nf
D1 = D // 2                 # coupling split
SIGMA_PROP = 0.5            # args.sigma_prop
LOG2PI = float(np.log(2.0 * np.pi))


def nf_kernel(x_ref, mu_ref, lv_ref, w1_ref, b1_ref, w2_ref, b2_ref,
              xnf_ref, stats_ref):
    nb, k, d = x_ref.shape          # nb components in this grid step
    m = nb * k                      # flattened matmul rows
    d_half = d // 2
    n_layers = w1_ref.shape[0]

    x3 = x_ref[...]                 # (nb, K, D) raw (pre-scale) samples
    mu3 = mu_ref[...]               # (nb, 1, D)
    lv3 = lv_ref[...]               # (nb, 1, D)

    # samples = samples * sqrt(var).unsqueeze(1) + mu.unsqueeze(1)
    std3 = jnp.exp(0.5 * lv3)       # single EUP exp; var never materialized
    xs3 = x3 * std3 + mu3           # broadcast over K (sublane axis), (nb, K, D)

    # ---- log proposal N(xs; mu, diag(exp(lv))) ----
    # (xs - mu)^2 / var == samples^2  (algebraic identity) -> no exp / divide.
    cst = 0.5 * d * LOG2PI
    chisq3 = jnp.sum(x3 * x3, axis=2, keepdims=True)          # (nb, K, 1)
    logdet_cov3 = jnp.sum(lv3, axis=2, keepdims=True)         # (nb, 1, 1)
    log_prop = (-0.5 * chisq3 - cst - 0.5 * logdet_cov3).reshape(m, 1)

    # ---- RealNVP coupling layers over all M = nb*K rows at once ----
    # Layout-free flatten: each (K, D) slab is sublane-tile aligned (K == 8).
    z = xs3.reshape(m, d)
    lane = jax.lax.broadcasted_iota(jnp.int32, (m, d), 1)
    keep_first = lane < d_half                                # even layers condition on 1st half
    keep_second = jnp.logical_not(keep_first)                 # odd layers condition on 2nd half

    hi = jax.lax.Precision.HIGHEST
    log_det = jnp.zeros((m, 1), jnp.float32)
    for l in range(n_layers):                                 # static unroll (L is small)
        keep = keep_first if l % 2 == 0 else keep_second
        # s-net and t-net fused: W1p (D, 2H), W2p (2H, 2D+1); masks + sum_j s_j
        # baked into the packed weights on the host (see pack_flow_params).
        h = jnp.tanh(jnp.dot(z, w1_ref[l], precision=hi,
                             preferred_element_type=jnp.float32) + b1_ref[l])
        st = jnp.dot(h, w2_ref[l], precision=hi,
                     preferred_element_type=jnp.float32) + b2_ref[l]
        s = st[:, :d]                                         # already masked (zeroed cols)
        t = st[:, d:2 * d]
        # TODO(synk): exp(s) unclamped, matching the plain RealNVP coupling update.
        z = jnp.where(keep, z, z * jnp.exp(s) + t)
        log_det = log_det + st[:, 2 * d:2 * d + 1]            # sum_j s_j via extra W2 column

    xnf_ref[...] = z.reshape(nb, k, d)
    # TODO(synk): args.log_target_t is user-supplied; standard normal N(0, I) used.
    log_target = -cst - 0.5 * jnp.sum(z * z, axis=1, keepdims=True)     # (M, 1)
    # single lane-packed store: column 0 = log_target, column 1 = log_proposal - log_det
    stats_ref[...] = jnp.concatenate([log_target, log_prop - log_det],
                                     axis=1).reshape(nb, k, 2)


def pack_flow_params(w1, b1, w2, b2):
    """Host-side (one-off) packing of the RealNVP parameters.

    w1: (L, 2, D, H), b1: (L, 2, 1, H), w2: (L, 2, H, D), b2: (L, 2, 1, D)
      index 0 = scale net, index 1 = translate net.

    Produces, per layer:
      W1p (D, 2H)      = [w1_s | w1_t] with the rows of the non-conditioned half zeroed
                         (bakes in `zb = z * bmask`)
      b1p (1, 2H)      = [b1_s | b1_t]
      W2p (2H, 2D+1)   = blockdiag(w2_s, w2_t) with the columns of the conditioned half
                         zeroed (bakes in `* (1 - bmask)`) plus one extra column holding
                         row-sums of the masked w2_s (so sum_j s_j comes out of the MXU)
      b2p (1, 2D+1)    = [b2_s_masked | b2_t_masked | sum(b2_s_masked)]
    """
    w1 = np.asarray(w1, np.float32); b1 = np.asarray(b1, np.float32)
    w2 = np.asarray(w2, np.float32); b2 = np.asarray(b2, np.float32)
    lane = np.arange(D)
    w1p = np.zeros((L, D, 2 * H), np.float32)
    b1p = np.zeros((L, 1, 2 * H), np.float32)
    w2p = np.zeros((L, 2 * H, 2 * D + 1), np.float32)
    b2p = np.zeros((L, 1, 2 * D + 1), np.float32)
    for l in range(L):
        keep = (lane < D1) if l % 2 == 0 else (lane >= D1)    # conditioned lanes
        in_mask = keep.astype(np.float32)[:, None]            # (D, 1): zero masked input rows
        out_mask = (~keep).astype(np.float32)[None, :]        # (1, D): zero conditioned out cols
        w1_s = w1[l, 0] * in_mask
        w1_t = w1[l, 1] * in_mask
        w2_s = w2[l, 0] * out_mask
        w2_t = w2[l, 1] * out_mask
        b2_s = b2[l, 0] * out_mask
        b2_t = b2[l, 1] * out_mask
        w1p[l] = np.concatenate([w1_s, w1_t], axis=1)
        b1p[l] = np.concatenate([b1[l, 0], b1[l, 1]], axis=1)
        w2p[l, :H, :D] = w2_s
        w2p[l, H:, D:2 * D] = w2_t
        w2p[l, :H, 2 * D] = w2_s.sum(axis=1)                  # fold sum_j s_j into extra column
        b2p[l, 0, :D] = b2_s[0]
        b2p[l, 0, D:2 * D] = b2_t[0]
        b2p[l, 0, 2 * D] = b2_s.sum()
    return (jnp.asarray(w1p), jnp.asarray(b1p), jnp.asarray(w2p), jnp.asarray(b2p))


def _n_grid_blocks(n):
    """2 'parallel' grid steps on v7x (2 TensorCores/chip); 1 step elsewhere
    (v5e/v6e have a single TensorCore, so extra steps are pure overhead)."""
    try:
        kind = jax.devices()[0].device_kind.lower()
    except Exception:
        return 1
    if "v7" in kind and n >= 2 and n % 2 == 0:
        return 2
    return 1


def normalizing_flow_forward(samples, mu, logvar, w1p, b1p, w2p, b2p,
                             n_blocks=None):
    """samples: (N, K, D); mu, logvar: (N, D); packed flow params from pack_flow_params.

    Total padded VMEM footprint is well under ~200 KiB (weights resident,
    I/O tiles double-buffered) — far below scoped defaults on v5e/v6e/v7x,
    so no vmem_limit_bytes tuning is needed at these sizes.
    """
    n, k, d = samples.shape
    mu3 = mu.reshape(n, 1, d)        # metadata-only reshape; broadcast happens in-kernel
    lv3 = logvar.reshape(n, 1, d)

    if n_blocks is None:
        n_blocks = _n_grid_blocks(n)
    assert n % n_blocks == 0
    nb = n // n_blocks               # components per grid step (all of them by default)

    grid_spec = pltpu.PrefetchScalarGridSpec(
        num_scalar_prefetch=0,
        grid=(n_blocks,),                                              # 1 step (2 on v7x)
        in_specs=[
            pl.BlockSpec((nb, k, d), lambda i: (i, 0, 0)),             # samples block
            pl.BlockSpec((nb, 1, d), lambda i: (i, 0, 0)),             # mu block
            pl.BlockSpec((nb, 1, d), lambda i: (i, 0, 0)),             # logvar block
            pl.BlockSpec((L, D, 2 * H), lambda i: (0, 0, 0)),          # resident weights
            pl.BlockSpec((L, 1, 2 * H), lambda i: (0, 0, 0)),
            pl.BlockSpec((L, 2 * H, 2 * D + 1), lambda i: (0, 0, 0)),
            pl.BlockSpec((L, 1, 2 * D + 1), lambda i: (0, 0, 0)),
        ],
        out_specs=[
            pl.BlockSpec((nb, k, d), lambda i: (i, 0, 0)),             # x_nf
            pl.BlockSpec((nb, k, 2), lambda i: (i, 0, 0)),             # [log_target | log_prop]
        ],
    )

    xnf, stats = pl.pallas_call(
        nf_kernel,
        out_shape=(
            jax.ShapeDtypeStruct((n, k, d), jnp.float32),
            jax.ShapeDtypeStruct((n, k, 2), jnp.float32),
        ),
        grid_spec=grid_spec,
        compiler_params=pltpu.CompilerParams(dimension_semantics=("parallel",)),
    )(samples, mu3, lv3, w1p, b1p, w2p, b2p)

    return xnf, stats[..., 0], stats[..., 1]


def reference(samples, mu, logvar, w1, b1, w2, b2):
    """Plain-JAX reference of the same forward (un-fused / un-simplified form)."""
    hi = jax.lax.Precision.HIGHEST
    n, k, d = samples.shape
    std = jnp.exp(0.5 * logvar)[:, None, :]
    var = jnp.exp(logvar)
    xs = samples * std + mu[:, None, :]
    z = xs.reshape(-1, d)
    lane = np.arange(d)
    log_det = jnp.zeros(z.shape[0])
    for l in range(L):
        bm = (lane < D1).astype(np.float32) if l % 2 == 0 else (lane >= D1).astype(np.float32)
        zb = z * bm
        s = (jnp.dot(jnp.tanh(jnp.dot(zb, w1[l, 0], precision=hi) + b1[l, 0]),
                     w2[l, 0], precision=hi) + b2[l, 0]) * (1.0 - bm)
        t = (jnp.dot(jnp.tanh(jnp.dot(zb, w1[l, 1], precision=hi) + b1[l, 1]),
                     w2[l, 1], precision=hi) + b2[l, 1]) * (1.0 - bm)
        z = zb + (1.0 - bm) * (z * jnp.exp(s) + t)
        log_det = log_det + jnp.sum(s, axis=1)
    cst = 0.5 * d * np.log(2.0 * np.pi)
    lt = -cst - 0.5 * jnp.sum(z * z, axis=1)
    y = xs - mu[:, None, :]
    chisq = jnp.sum(y * y / var[:, None, :], axis=-1)
    lp = -0.5 * chisq - cst - 0.5 * jnp.sum(logvar, axis=-1)[:, None]
    lp = lp - log_det.reshape(n, k)
    return z.reshape(n, k, d), lt.reshape(n, k), lp


if __name__ == "__main__":
    key = jax.random.PRNGKey(0)
    k1, k2, k3, k4, k5, k6 = jax.random.split(key, 6)

    # inputs
    samples = jax.random.normal(k1, (N, K, D), dtype=jnp.float32)

    # parameters: mu_ ~ current_prop.mean, logvar_ = 2*log(sigma_prop)
    mu_ = jax.random.normal(k2, (N, D), dtype=jnp.float32)
    logvar_ = jnp.full((N, D), 2.0 * float(np.log(SIGMA_PROP)), dtype=jnp.float32)

    # RealNVP params: [layer, {scale_net, translate_net}, ...]
    w1 = 0.1 * jax.random.normal(k3, (L, 2, D, H), dtype=jnp.float32)
    b1 = 0.1 * jax.random.normal(k4, (L, 2, 1, H), dtype=jnp.float32)

    # Case 1: zero_initialization() as in the module -> identity flow, log_det = 0.
    w2_zero = jnp.zeros((L, 2, H, D), dtype=jnp.float32)
    b2_zero = jnp.zeros((L, 2, 1, D), dtype=jnp.float32)
    # Case 2: small non-zero output layers (trained-like) to exercise the coupling math.
    w2_rnd = 0.05 * jax.random.normal(k5, (L, 2, H, D), dtype=jnp.float32)
    b2_rnd = 0.05 * jax.random.normal(k6, (L, 2, 1, D), dtype=jnp.float32)

    for w2, b2 in ((w2_zero, b2_zero), (w2_rnd, b2_rnd)):
        w1p, b1p, w2p, b2p = pack_flow_params(w1, b1, w2, b2)
        out = normalizing_flow_forward(samples, mu_, logvar_, w1p, b1p, w2p, b2p)
        out = jax.block_until_ready(out)
        ref = reference(samples, mu_, logvar_, w1, b1, w2, b2)
        for got, want in zip(out, ref):
            np.testing.assert_allclose(np.asarray(got), np.asarray(want),
                                       rtol=1e-4, atol=1e-4)

    print("KERNEL_OK")
</pallas_src>

<mosaic_0001>
module attributes {stable_mosaic.version = 11 : i64} {
  func.func @nf_kernel(%arg0: i32, %arg1: memref<4x8x8xf32, #tpu.memory_space<vmem>>, %arg2: memref<4x1x8xf32, #tpu.memory_space<vmem>>, %arg3: memref<4x1x8xf32, #tpu.memory_space<vmem>>, %arg4: memref<2x8x32xf32, #tpu.memory_space<vmem>>, %arg5: memref<2x1x32xf32, #tpu.memory_space<vmem>>, %arg6: memref<2x32x17xf32, #tpu.memory_space<vmem>>, %arg7: memref<2x1x17xf32, #tpu.memory_space<vmem>>, %arg8: memref<4x8x8xf32, #tpu.memory_space<vmem>>, %arg9: memref<4x8x2xf32, #tpu.memory_space<vmem>>) attributes {dimension_semantics = [#tpu.dimension_semantics<parallel>], iteration_bounds = array<i64: 1>, scalar_prefetch = 0 : i64, scratch_operands = 0 : i64, tpu.core_type = #tpu.core_type<tc>, window_params = [{transform_indices = @transform_0, window_bounds = array<i64: 4, 8, 8>}, {transform_indices = @transform_1, window_bounds = array<i64: 4, 1, 8>}, {transform_indices = @transform_2, window_bounds = array<i64: 4, 1, 8>}, {pipeline_mode = #tpu.pipeline_mode<synchronous>, transform_indices = @transform_3, window_bounds = array<i64: 2, 8, 32>}, {pipeline_mode = #tpu.pipeline_mode<synchronous>, transform_indices = @transform_4, window_bounds = array<i64: 2, 1, 32>}, {pipeline_mode = #tpu.pipeline_mode<synchronous>, transform_indices = @transform_5, window_bounds = array<i64: 2, 32, 17>}, {pipeline_mode = #tpu.pipeline_mode<synchronous>, transform_indices = @transform_6, window_bounds = array<i64: 2, 1, 17>}, {transform_indices = @transform_7, window_bounds = array<i64: 4, 8, 8>}, {transform_indices = @transform_8, window_bounds = array<i64: 4, 8, 2>}]} {
    %c0 = arith.constant 0 : index
    %c0_0 = arith.constant 0 : index
    %c0_1 = arith.constant 0 : index
    %0 = vector.load %arg1[%c0, %c0_0, %c0_1] : memref<4x8x8xf32, #tpu.memory_space<vmem>>, vector<4x8x8xf32>
    %c0_2 = arith.constant 0 : index
    %c0_3 = arith.constant 0 : index
    %c0_4 = arith.constant 0 : index
    %1 = vector.load %arg2[%c0_2, %c0_3, %c0_4] : memref<4x1x8xf32, #tpu.memory_space<vmem>>, vector<4x1x8xf32>
    %c0_5 = arith.constant 0 : index
    %c0_6 = arith.constant 0 : index
    %c0_7 = arith.constant 0 : index
    %2 = vector.load %arg3[%c0_5, %c0_6, %c0_7] : memref<4x1x8xf32, #tpu.memory_space<vmem>>, vector<4x1x8xf32>
    %cst = arith.constant 5.000000e-01 : f32
    %3 = vector.broadcast %cst : f32 to vector<4x1x8xf32>
    %4 = arith.mulf %3, %2 : vector<4x1x8xf32>
    %5 = math.exp %4 : vector<4x1x8xf32>
    %6 = vector.broadcast %5 : vector<4x1x8xf32> to vector<4x8x8xf32>
    %7 = arith.mulf %0, %6 : vector<4x8x8xf32>
    %8 = vector.broadcast %1 : vector<4x1x8xf32> to vector<4x8x8xf32>
    %9 = arith.addf %7, %8 : vector<4x8x8xf32>
    %10 = arith.mulf %0, %0 : vector<4x8x8xf32>
    %cst_8 = arith.constant dense<0.000000e+00> : vector<4x8xf32>
    %11 = vector.multi_reduction <add>, %10, %cst_8 [2] : vector<4x8x8xf32> to vector<4x8xf32>
    %12 = vector.shape_cast %11 : vector<4x8xf32> to vector<4x8x1xf32>
    %cst_9 = arith.constant dense<0.000000e+00> : vector<4x1xf32>
    %13 = vector.multi_reduction <add>, %2, %cst_9 [2] : vector<4x1x8xf32> to vector<4x1xf32>
    %14 = vector.shape_cast %13 : vector<4x1xf32> to vector<4x1x1xf32>
    %cst_10 = arith.constant -5.000000e-01 : f32
    %15 = vector.broadcast %cst_10 : f32 to vector<4x8x1xf32>
    %16 = arith.mulf %15, %12 : vector<4x8x1xf32>
    %cst_11 = arith.constant 7.35150814 : f32
    %17 = vector.broadcast %cst_11 : f32 to vector<4x8x1xf32>
    %18 = arith.subf %16, %17 : vector<4x8x1xf32>
    %cst_12 = arith.constant 5.000000e-01 : f32
    %19 = vector.broadcast %cst_12 : f32 to vector<4x1x1xf32>
    %20 = arith.mulf %19, %14 : vector<4x1x1xf32>
    %21 = vector.broadcast %20 : vector<4x1x1xf32> to vector<4x8x1xf32>
    %22 = arith.subf %18, %21 : vector<4x8x1xf32>
    %23 = vector.shape_cast %22 : vector<4x8x1xf32> to vector<32x1xf32>
    %24 = vector.shape_cast %9 : vector<4x8x8xf32> to vector<32x8xf32>
    %25 = tpu.iota {dimensions = array<i32: 1>} : vector<32x8xi32>
    %c4_i32 = arith.constant 4 : i32
    %26 = vector.broadcast %c4_i32 : i32 to vector<32x8xi32>
    %27 = arith.cmpi slt, %25, %26 : vector<32x8xi32>
    %cst_13 = arith.constant dense<true> : vector<32x8xi1>
    %28 = arith.xori %27, %cst_13 : vector<32x8xi1>
    %cst_14 = arith.constant 0.000000e+00 : f32
    %29 = vector.broadcast %cst_14 : f32 to vector<32x1xf32>
    %c0_15 = arith.constant 0 : index
    %c0_16 = arith.constant 0 : index
    %c0_17 = arith.constant 0 : index
    %30 = vector.load %arg4[%c0_15, %c0_16, %c0_17] : memref<2x8x32xf32, #tpu.memory_space<vmem>>, vector<1x8x32xf32>
    %31 = vector.shape_cast %30 : vector<1x8x32xf32> to vector<8x32xf32>
    %cst_18 = arith.constant dense<0.000000e+00> : vector<32x32xf32>
    %32 = tpu.matmul %24, %31, %cst_18 {dimension_numbers = #tpu.dot_dimension_numbers<[1], [0], [0], [1], [0, 0, 1, 1], [], []>, precision = #tpu.contract_precision<fp32>} : vector<32x8xf32>, vector<8x32xf32>, vector<32x32xf32> -> vector<32x32xf32>
    %c0_19 = arith.constant 0 : index
    %c0_20 = arith.constant 0 : index
    %c0_21 = arith.constant 0 : index
    %33 = vector.load %arg5[%c0_19, %c0_20, %c0_21] : memref<2x1x32xf32, #tpu.memory_space<vmem>>, vector<1x1x32xf32>
    %34 = vector.shape_cast %33 : vector<1x1x32xf32> to vector<1x32xf32>
    %35 = vector.broadcast %34 : vector<1x32xf32> to vector<32x32xf32>
    %36 = arith.addf %32, %35 : vector<32x32xf32>
    %37 = math.tanh %36 : vector<32x32xf32>
    %c0_22 = arith.constant 0 : index
    %c0_23 = arith.constant 0 : index
    %c0_24 = arith.constant 0 : index
    %38 = vector.load %arg6[%c0_22, %c0_23, %c0_24] : memref<2x32x17xf32, #tpu.memory_space<vmem>>, vector<1x32x17xf32>
    %39 = vector.shape_cast %38 : vector<1x32x17xf32> to vector<32x17xf32>
    %cst_25 = arith.constant dense<0.000000e+00> : vector<32x17xf32>
    %40 = tpu.matmul %37, %39, %cst_25 {dimension_numbers = #tpu.dot_dimension_numbers<[1], [0], [0], [1], [0, 0, 1, 1], [], []>, precision = #tpu.contract_precision<fp32>} : vector<32x32xf32>, vector<32x17xf32>, vector<32x17xf32> -> vector<32x17xf32>
    %c0_26 = arith.constant 0 : index
    %c0_27 = arith.constant 0 : index
    %c0_28 = arith.constant 0 : index
    %41 = vector.load %arg7[%c0_26, %c0_27, %c0_28] : memref<2x1x17xf32, #tpu.memory_space<vmem>>, vector<1x1x17xf32>
    %42 = vector.shape_cast %41 : vector<1x1x17xf32> to vector<1x17xf32>
    %43 = vector.broadcast %42 : vector<1x17xf32> to vector<32x17xf32>
    %44 = arith.addf %40, %43 : vector<32x17xf32>
    %45 = vector.extract_strided_slice %44 {offsets = [0, 0], sizes = [32, 8], strides = [1, 1]} : vector<32x17xf32> to vector<32x8xf32>
    %46 = vector.extract_strided_slice %44 {offsets = [0, 8], sizes = [32, 8], strides = [1, 1]} : vector<32x17xf32> to vector<32x8xf32>
    %47 = math.exp %45 : vector<32x8xf32>
    %48 = arith.mulf %24, %47 : vector<32x8xf32>
    %49 = arith.addf %48, %46 : vector<32x8xf32>
    %50 = arith.select %27, %24, %49 : vector<32x8xi1>, vector<32x8xf32>
    %51 = vector.extract_strided_slice %44 {offsets = [0, 16], sizes = [32, 1], strides = [1, 1]} : vector<32x17xf32> to vector<32x1xf32>
    %52 = arith.addf %29, %51 : vector<32x1xf32>
    %c1 = arith.constant 1 : index
    %c0_29 = arith.constant 0 : index
    %c0_30 = arith.constant 0 : index
    %53 = vector.load %arg4[%c1, %c0_29, %c0_30] : memref<2x8x32xf32, #tpu.memory_space<vmem>>, vector<1x8x32xf32>
    %54 = vector.shape_cast %53 : vector<1x8x32xf32> to vector<8x32xf32>
    %cst_31 = arith.constant dense<0.000000e+00> : vector<32x32xf32>
    %55 = tpu.matmul %50, %54, %cst_31 {dimension_numbers = #tpu.dot_dimension_numbers<[1], [0], [0], [1], [0, 0, 1, 1], [], []>, precision = #tpu.contract_precision<fp32>} : vector<32x8xf32>, vector<8x32xf32>, vector<32x32xf32> -> vector<32x32xf32>
    %c1_32 = arith.constant 1 : index
    %c0_33 = arith.constant 0 : index
    %c0_34 = arith.constant 0 : index
    %56 = vector.load %arg5[%c1_32, %c0_33, %c0_34] : memref<2x1x32xf32, #tpu.memory_space<vmem>>, vector<1x1x32xf32>
    %57 = vector.shape_cast %56 : vector<1x1x32xf32> to vector<1x32xf32>
    %58 = vector.broadcast %57 : vector<1x32xf32> to vector<32x32xf32>
    %59 = arith.addf %55, %58 : vector<32x32xf32>
    %60 = math.tanh %59 : vector<32x32xf32>
    %c1_35 = arith.constant 1 : index
    %c0_36 = arith.constant 0 : index
    %c0_37 = arith.constant 0 : index
    %61 = vector.load %arg6[%c1_35, %c0_36, %c0_37] : memref<2x32x17xf32, #tpu.memory_space<vmem>>, vector<1x32x17xf32>
    %62 = vector.shape_cast %61 : vector<1x32x17xf32> to vector<32x17xf32>
    %cst_38 = arith.constant dense<0.000000e+00> : vector<32x17xf32>
    %63 = tpu.matmul %60, %62, %cst_38 {dimension_numbers = #tpu.dot_dimension_numbers<[1], [0], [0], [1], [0, 0, 1, 1], [], []>, precision = #tpu.contract_precision<fp32>} : vector<32x32xf32>, vector<32x17xf32>, vector<32x17xf32> -> vector<32x17xf32>
    %c1_39 = arith.constant 1 : index
    %c0_40 = arith.constant 0 : index
    %c0_41 = arith.constant 0 : index
    %64 = vector.load %arg7[%c1_39, %c0_40, %c0_41] : memref<2x1x17xf32, #tpu.memory_space<vmem>>, vector<1x1x17xf32>
    %65 = vector.shape_cast %64 : vector<1x1x17xf32> to vector<1x17xf32>
    %66 = vector.broadcast %65 : vector<1x17xf32> to vector<32x17xf32>
    %67 = arith.addf %63, %66 : vector<32x17xf32>
    %68 = vector.extract_strided_slice %67 {offsets = [0, 0], sizes = [32, 8], strides = [1, 1]} : vector<32x17xf32> to vector<32x8xf32>
    %69 = vector.extract_strided_slice %67 {offsets = [0, 8], sizes = [32, 8], strides = [1, 1]} : vector<32x17xf32> to vector<32x8xf32>
    %70 = math.exp %68 : vector<32x8xf32>
    %71 = arith.mulf %50, %70 : vector<32x8xf32>
    %72 = arith.addf %71, %69 : vector<32x8xf32>
    %73 = arith.select %28, %50, %72 : vector<32x8xi1>, vector<32x8xf32>
    %74 = vector.extract_strided_slice %67 {offsets = [0, 16], sizes = [32, 1], strides = [1, 1]} : vector<32x17xf32> to vector<32x1xf32>
    %75 = arith.addf %52, %74 : vector<32x1xf32>
    %76 = vector.shape_cast %73 : vector<32x8xf32> to vector<4x8x8xf32>
    %c0_42 = arith.constant 0 : index
    %c0_43 = arith.constant 0 : index
    %c0_44 = arith.constant 0 : index
    %77 = vector.load %arg8[%c0_42, %c0_43, %c0_44] : memref<4x8x8xf32, #tpu.memory_space<vmem>>, vector<4x8x8xf32>
    tpu.vector_store %arg8[%c0_42, %c0_43, %c0_44], %76 {strides = array<i32>} : memref<4x8x8xf32, #tpu.memory_space<vmem>>, vector<4x8x8xf32>,
    %78 = arith.mulf %73, %73 : vector<32x8xf32>
    %cst_45 = arith.constant dense<0.000000e+00> : vector<32xf32>
    %79 = vector.multi_reduction <add>, %78, %cst_45 [1] : vector<32x8xf32> to vector<32xf32>
    %80 = vector.shape_cast %79 : vector<32xf32> to vector<32x1xf32>
    %cst_46 = arith.constant 5.000000e-01 : f32
    %81 = vector.broadcast %cst_46 : f32 to vector<32x1xf32>
    %82 = arith.mulf %81, %80 : vector<32x1xf32>
    %cst_47 = arith.constant -7.35150814 : f32
    %83 = vector.broadcast %cst_47 : f32 to vector<32x1xf32>
    %84 = arith.subf %83, %82 : vector<32x1xf32>
    %85 = arith.subf %23, %75 : vector<32x1xf32>
    %86 = tpu.concatenate %84, %85 in 1 : vector<32x1xf32>, vector<32x1xf32> -> vector<32x2xf32>
    %87 = vector.shape_cast %86 : vector<32x2xf32> to vector<4x8x2xf32>
    %c0_48 = arith.constant 0 : index
    %c0_49 = arith.constant 0 : index
    %c0_50 = arith.constant 0 : index
    %88 = vector.load %arg9[%c0_48, %c0_49, %c0_50] : memref<4x8x2xf32, #tpu.memory_space<vmem>>, vector<4x8x2xf32>
    tpu.vector_store %arg9[%c0_48, %c0_49, %c0_50], %87 {strides = array<i32>} : memref<4x8x2xf32, #tpu.memory_space<vmem>>, vector<4x8x2xf32>,
    return
  }
  func.func @transform_0(%arg0: i32) -> (i32, i32, i32) {
    %c0_i32 = arith.constant 0 : i32
    %c0_i32_0 = arith.constant 0 : i32
    %c0_i32_1 = arith.constant 0 : i32
    return %arg0, %c0_i32, %c0_i32_0 : i32, i32, i32
  }
  func.func @transform_1(%arg0: i32) -> (i32, i32, i32) {
    %c0_i32 = arith.constant 0 : i32
    %c0_i32_0 = arith.constant 0 : i32
    %c0_i32_1 = arith.constant 0 : i32
    return %arg0, %c0_i32, %c0_i32_0 : i32, i32, i32
  }
  func.func @transform_2(%arg0: i32) -> (i32, i32, i32) {
    %c0_i32 = arith.constant 0 : i32
    %c0_i32_0 = arith.constant 0 : i32
    %c0_i32_1 = arith.constant 0 : i32
    return %arg0, %c0_i32, %c0_i32_0 : i32, i32, i32
  }
  func.func @transform_3(%arg0: i32) -> (i32, i32, i32) {
    %c0_i32 = arith.constant 0 : i32
    %c0_i32_0 = arith.constant 0 : i32
    %c0_i32_1 = arith.constant 0 : i32
    %c0_i32_2 = arith.constant 0 : i32
    return %c0_i32, %c0_i32_0, %c0_i32_1 : i32, i32, i32
  }
  func.func @transform_4(%arg0: i32) -> (i32, i32, i32) {
    %c0_i32 = arith.constant 0 : i32
    %c0_i32_0 = arith.constant 0 : i32
    %c0_i32_1 = arith.constant 0 : i32
    %c0_i32_2 = arith.constant 0 : i32
    return %c0_i32, %c0_i32_0, %c0_i32_1 : i32, i32, i32
  }
  func.func @transform_5(%arg0: i32) -> (i32, i32, i32) {
    %c0_i32 = arith.constant 0 : i32
    %c0_i32_0 = arith.constant 0 : i32
    %c0_i32_1 = arith.constant 0 : i32
    %c0_i32_2 = arith.constant 0 : i32
    return %c0_i32, %c0_i32_0, %c0_i32_1 : i32, i32, i32
  }
  func.func @transform_6(%arg0: i32) -> (i32, i32, i32) {
    %c0_i32 = arith.constant 0 : i32
    %c0_i32_0 = arith.constant 0 : i32
    %c0_i32_1 = arith.constant 0 : i32
    %c0_i32_2 = arith.constant 0 : i32
    return %c0_i32, %c0_i32_0, %c0_i32_1 : i32, i32, i32
  }
  func.func @transform_7(%arg0: i32) -> (i32, i32, i32) {
    %c0_i32 = arith.constant 0 : i32
    %c0_i32_0 = arith.constant 0 : i32
    %c0_i32_1 = arith.constant 0 : i32
    return %arg0, %c0_i32, %c0_i32_0 : i32, i32, i32
  }
  func.func @transform_8(%arg0: i32) -> (i32, i32, i32) {
    %c0_i32 = arith.constant 0 : i32
    %c0_i32_0 = arith.constant 0 : i32
    %c0_i32_1 = arith.constant 0 : i32
    return %arg0, %c0_i32, %c0_i32_0 : i32, i32, i32
  }
}

</mosaic_0001>

<llo_original>
// kernel: tpu_custom_call.1
$region0: #{tpu_custom_call.1}
  #allocation0 [shape = 'u32[]', space=smem, size = 0x4, offset = 0x4, fixed_abs, tag = 'smem constant byte address 0x4 - core index']
  #allocation1 [shape = 'u32[144,128]{1,0:T(1,128)}', space=vmem, size = 0x12000, scoped, tag = 'internal scratch']
  %s0 = inlined_call_operand.vmem [shape: f32[4,8,8], index: 0, kind: input, shape index: {}]
  %s1 = inlined_call_operand.vmem [shape: f32[4,1,8], index: 1, kind: input, shape index: {}]
  %s2 = inlined_call_operand.vmem [shape: f32[4,1,8], index: 2, kind: input, shape index: {}]
  %s3 = inlined_call_operand.vmem [shape: f32[2,8,32], index: 3, kind: input, shape index: {}]
  %s4 = inlined_call_operand.vmem [shape: f32[2,1,32], index: 4, kind: input, shape index: {}]
  %s5 = inlined_call_operand.vmem [shape: f32[2,32,17], index: 5, kind: input, shape index: {}]
  %s6 = inlined_call_operand.vmem [shape: f32[2,1,17], index: 6, kind: input, shape index: {}]
  %s7 = inlined_call_operand.hbm [shape: f32[4,8,8], index: 7, kind: output, shape index: {0}]
  %s8 = inlined_call_operand.vmem [shape: f32[4,8,2], index: 8, kind: output, shape index: {1}]
  %9 = xla_tuple %s7, %s8
  %s10 = sld [smem:[#allocation0]]
  $region46: #{tpu_custom_call.1} parent=0
    _
  %s12 = ssub.s32 1, %s10
  %s13 = scalar_select 0, %s12, %s10
  $region1: #{tpu_custom_call.1} parent=0
    #allocation2 [shape = 'u8[16384]{0}', space=vmem, size = 0x4000, scoped, tag = 'output window, operand 0, single buffered']
    #allocation3 [shape = 's32[1]{0}', space=sflag, size = 0x4, scoped, tag = 'scoped memory for tpu_custom_call.1']
    %14 = vsyncpa [#allocation3], 0
    // Predicated region
    $region2: #{tpu_custom_call.1} parent=1 // pred_check
      _
    $region3: #{tpu_custom_call.1} parent=1 // pred_check_branch
      %16 = sbr.rel (0) target = $region5
    $region4: #{tpu_custom_call.1} parent=1 // pred_region
      _
    $region5: #{tpu_custom_call.1} parent=1 // pred_fallthru
      _
    // Predicated region
    $region6: #{tpu_custom_call.1} parent=1 // pred_check
      _
    $region7: #{tpu_custom_call.1} parent=1 // pred_check_branch
      %18 = sbr.rel (0) target = $region9
    $region8: #{tpu_custom_call.1} parent=1 // pred_region
      _
    $region9: #{tpu_custom_call.1} parent=1 // pred_fallthru
      _
    // Predicated region
    $region10: #{tpu_custom_call.1} parent=1 // pred_check
      _
    $region11: #{tpu_custom_call.1} parent=1 // pred_check_branch
      %20 = sbr.rel (0) target = $region13
    $region12: #{tpu_custom_call.1} parent=1 // pred_region
      _
    $region13: #{tpu_custom_call.1} parent=1 // pred_fallthru
      _
    // Predicated region
    $region14: #{tpu_custom_call.1} parent=1 // pred_check
      _
    $region15: #{tpu_custom_call.1} parent=1 // pred_check_branch
      %22 = sbr.rel (0) target = $region17
    $region16: #{tpu_custom_call.1} parent=1 // pred_region
      _
    $region17: #{tpu_custom_call.1} parent=1 // pred_fallthru
      _
    // Predicated region
    $region18: #{tpu_custom_call.1} parent=1 // pred_check
      _
    $region19: #{tpu_custom_call.1} parent=1 // pred_check_branch
      %24 = sbr.rel (0) target = $region21
    $region20: #{tpu_custom_call.1} parent=1 // pred_region
      _
    $region21: #{tpu_custom_call.1} parent=1 // pred_fallthru
      _
    // Predicated region
    $region22: #{tpu_custom_call.1} parent=1 // pred_check
      _
    $region23: #{tpu_custom_call.1} parent=1 // pred_check_branch
      %26 = sbr.rel (0) target = $region25
    $region24: #{tpu_custom_call.1} parent=1 // pred_region
      _
    $region25: #{tpu_custom_call.1} parent=1 // pred_fallthru
      _
    // Predicated region
    $region26: #{tpu_custom_call.1} parent=1 // pred_check
      _
    $region27: #{tpu_custom_call.1} parent=1 // pred_check_branch
      %28 = sbr.rel (0) target = $region29
    $region28: #{tpu_custom_call.1} parent=1 // pred_region
      _
    $region29: #{tpu_custom_call.1} parent=1 // pred_fallthru
      _
    %v29 = vld [vmem:[%s0] sm:$0xff]
    %v30 = vld [vmem:[%s0 + $0x8] sm:$0xff]
    %v31 = vld [vmem:[%s0 + $0x10] sm:$0xff]
    %v32 = vld [vmem:[%s0 + $0x18] sm:$0xff]
    %v33 = vld [vmem:[%s1] sm:$0x1]
    %v34 = vld [vmem:[%s1 + $0x1] sm:$0x1]
    %v35 = vld [vmem:[%s1 + $0x2] sm:$0x1]
    %v36 = vld [vmem:[%s1 + $0x3] sm:$0x1]
    %v37 = vld [vmem:[%s2] sm:$0x1]
    %v38 = vld [vmem:[%s2 + $0x1] sm:$0x1]
    %v39 = vld [vmem:[%s2 + $0x2] sm:$0x1]
    %v40 = vld [vmem:[%s2 + $0x3] sm:$0x1]
    %v41 = vmul.f32 %v37, 0.5
    %v42 = vmul.f32 %v38, 0.5
    %v43 = vmul.f32 %v39, 0.5
    %v44 = vmul.f32 %v40, 0.5
    %v45 = vmul.f32 %v41, 1.442695
    %v46 = vpow.pop %v45
    %v47 = vmul.f32 %v42, 1.442695
    %v48 = vpow.pop %v47
    %v49 = vmul.f32 %v43, 1.442695
    %v50 = vpow.pop %v49
    %v51 = vmul.f32 %v44, 1.442695
    %v52 = vpow.pop %v51
    %v57 = vlaneseq
    %v58 = vshrl.u32 %v57, 7
    %v59 = vsub.s32 0, %v58
    %v60 = vrot.slane %v46, %v59
    %v61 = vlaneseq
    %v62 = vshrl.u32 %v61, 7
    %v63 = vsub.s32 0, %v62
    %v64 = vrot.slane %v48, %v63
    %v65 = vlaneseq
    %v66 = vshrl.u32 %v65, 7
    %v67 = vsub.s32 0, %v66
    %v68 = vrot.slane %v50, %v67
    %v69 = vlaneseq
    %v70 = vshrl.u32 %v69, 7
    %v71 = vsub.s32 0, %v70
    %v72 = vrot.slane %v52, %v71
    %v77 = vmul.f32 %v29, %v60
    %v78 = vmul.f32 %v30, %v64
    %v79 = vmul.f32 %v31, %v68
    %v80 = vmul.f32 %v32, %v72
    %v85 = vlaneseq
    %v86 = vshrl.u32 %v85, 7
    %v87 = vsub.s32 0, %v86
    %v88 = vrot.slane %v33, %v87
    %v89 = vlaneseq
    %v90 = vshrl.u32 %v89, 7
    %v91 = vsub.s32 0, %v90
    %v92 = vrot.slane %v34, %v91
    %v93 = vlaneseq
    %v94 = vshrl.u32 %v93, 7
    %v95 = vsub.s32 0, %v94
    %v96 = vrot.slane %v35, %v95
    %v97 = vlaneseq
    %v98 = vshrl.u32 %v97, 7
    %v99 = vsub.s32 0, %v98
    %v100 = vrot.slane %v36, %v99
    %v105 = vadd.f32 %v77, %v88
    %v106 = vadd.f32 %v78, %v92
    %v107 = vadd.f32 %v79, %v96
    %v108 = vadd.f32 %v80, %v100
    %v109 = vmul.f32 %v29, %v29
    %v110 = vmul.f32 %v30, %v30
    %v111 = vmul.f32 %v31, %v31
    %v112 = vmul.f32 %v32, %v32
    %vm113 = vcmask 64512
    %v114 = vsel %vm113, %v109, 0.0
    %115 = vadd.xlane.f32.xlu0 %v114
    %v116 = vpop.xlane.xlu0 %115
    %v117 = vsel %vm113, %v110, 0.0
    %118 = vadd.xlane.f32.xlu0 %v117
    %v119 = vpop.xlane.xlu0 %118
    %v120 = vsel %vm113, %v111, 0.0
    %121 = vadd.xlane.f32.xlu0 %v120
    %v122 = vpop.xlane.xlu0 %121
    %v123 = vsel %vm113, %v112, 0.0
    %124 = vadd.xlane.f32.xlu0 %v123
    %v125 = vpop.xlane.xlu0 %124
    %vm126 = vcmask 57344
    %v127 = vsel %vm126, %v37, 0.0
    %128 = vadd.xlane.f32.xlu0 %v127
    %v129 = vpop.xlane.xlu0 %128
    %v130 = vsel %vm126, %v38, 0.0
    %131 = vadd.xlane.f32.xlu0 %v130
    %v132 = vpop.xlane.xlu0 %131
    %v133 = vsel %vm126, %v39, 0.0
    %134 = vadd.xlane.f32.xlu0 %v133
    %v135 = vpop.xlane.xlu0 %134
    %v136 = vsel %vm126, %v40, 0.0
    %137 = vadd.xlane.f32.xlu0 %v136
    %v138 = vpop.xlane.xlu0 %137
    %v139 = vmul.f32 %v116, -0.5
    %v140 = vmul.f32 %v119, -0.5
    %v141 = vmul.f32 %v122, -0.5
    %v142 = vmul.f32 %v125, -0.5
    %v143 = vsub.f32 %v139, 7.351508
    %v144 = vsub.f32 %v140, 7.351508
    %v145 = vsub.f32 %v141, 7.351508
    %v146 = vsub.f32 %v142, 7.351508
    %v147 = vmul.f32 %v129, 0.5
    %v148 = vmul.f32 %v132, 0.5
    %v149 = vmul.f32 %v135, 0.5
    %v150 = vmul.f32 %v138, 0.5
    %v151 = vlaneseq
    %v152 = vshrl.u32 %v151, 7
    %v153 = vsub.s32 0, %v152
    %v154 = vrot.slane %v147, %v153
    %v155 = vlaneseq
    %v156 = vshrl.u32 %v155, 7
    %v157 = vsub.s32 0, %v156
    %v158 = vrot.slane %v148, %v157
    %v159 = vlaneseq
    %v160 = vshrl.u32 %v159, 7
    %v161 = vsub.s32 0, %v160
    %v162 = vrot.slane %v149, %v161
    %v163 = vlaneseq
    %v164 = vshrl.u32 %v163, 7
    %v165 = vsub.s32 0, %v164
    %v166 = vrot.slane %v150, %v165
    %v167 = vsub.f32 %v143, %v154
    %v168 = vsub.f32 %v144, %v158
    %v169 = vsub.f32 %v145, %v162
    %v170 = vsub.f32 %v146, %v166
    %v171 = vlaneseq
    %v172 = vand.u32 %v171, 127
    %vm173 = vcmp.lt.s32.totalorder %v172, 4
    %vm174 = vmxor %vm173, 1
    %v175 = vld [vmem:[%s3] sm:$0xff]
    %v176 = vld [vmem:[%s4] sm:$0x1]
    %v178 = vlaneseq
    %v179 = vshrl.u32 %v178, 7
    %v180 = vsub.s32 0, %v179
    %v181 = vrot.slane %v176, %v180
    %v184 = vsel %vm113, %v105, 0
    %v187 = vsel %vm113, %v106, 0
    %v190 = vsel %vm113, %v107, 0
    %v193 = vsel %vm113, %v108, 0
    %195 = vmatprep.subr.mxu0 0.0
    %v196 = vand.u32 %v175, 4294901760
    %197 = vmatpush1.msra.mxu0 %v196
    %198 = vmatprep.subr.mxu0 0.0
    %199 = vmatpush1.msra.mxu0 0.0
    %200 = vmatprep.subr.mxu0 0.0
    %201 = vmatpush1.msra.mxu0 0.0
    %202 = vmatprep.subr.mxu0 0.0
    %203 = vmatpush1.msra.mxu0 0.0
    %204 = vmatprep.subr.mxu0 0.0
    %205 = vmatpush1.msra.mxu0 0.0
    %206 = vmatprep.subr.mxu0 0.0
    %207 = vmatpush1.msra.mxu0 0.0
    %208 = vmatprep.subr.mxu0 0.0
    %209 = vmatpush1.msra.mxu0 0.0
    %210 = vmatprep.subr.mxu0 0.0
    %211 = vmatpush1.msra.mxu0 0.0
    %212 = vmatprep.subr.mxu0 0.0
    %213 = vmatpush1.msra.mxu0 0.0
    %214 = vmatprep.subr.mxu0 0.0
    %215 = vmatpush1.msra.mxu0 0.0
    %216 = vmatprep.subr.mxu0 0.0
    %217 = vmatpush1.msra.mxu0 0.0
    %218 = vmatprep.subr.mxu0 0.0
    %219 = vmatpush1.msra.mxu0 0.0
    %220 = vmatprep.subr.mxu0 0.0
    %221 = vmatpush1.msra.mxu0 0.0
    %222 = vmatprep.subr.mxu0 0.0
    %223 = vmatpush1.msra.mxu0 0.0
    %224 = vmatprep.subr.mxu0 0.0
    %225 = vmatpush1.msra.mxu0 0.0
    %226 = vmatprep.subr.mxu0 0.0
    %227 = vmatpush1.msra.mxu0 0.0
    %228 = vmatprep.subr.mxu0 0.0
    %229 = vmatpush1.msra.mxu0 0.0
    %230 = vmatprep.subr.mxu0 0.0
    %231 = vmatpush1.msra.mxu0 0.0
    %232 = vmatprep.subr.mxu0 0.0
    %233 = vmatpush1.msra.mxu0 0.0
    %234 = vmatprep.subr.mxu0 0.0
    %235 = vmatpush1.msra.mxu0 0.0
    %236 = vmatprep.subr.mxu0 0.0
    %237 = vmatpush1.msra.mxu0 0.0
    %238 = vmatprep.subr.mxu0 0.0
    %239 = vmatpush1.msra.mxu0 0.0
    %240 = vmatprep.subr.mxu0 0.0
    %241 = vmatpush1.msra.mxu0 0.0
    %242 = vmatprep.subr.mxu0 0.0
    %243 = vmatpush1.msra.mxu0 0.0
    %244 = vmatprep.subr.mxu0 0.0
    %245 = vmatpush1.msra.mxu0 0.0
    %246 = vmatprep.subr.mxu0 0.0
    %247 = vmatpush1.msra.mxu0 0.0
    %248 = vmatprep.subr.mxu0 0.0
    %249 = vmatpush1.msra.mxu0 0.0
    %250 = vmatprep.subr.mxu0 0.0
    %251 = vmatpush1.msra.mxu0 0.0
    %252 = vmatprep.subr.mxu0 0.0
    %253 = vmatpush1.msra.mxu0 0.0
    %254 = vmatprep.subr.mxu0 0.0
    %255 = vmatpush1.msra.mxu0 0.0
    %256 = vmatprep.subr.mxu0 0.0
    %257 = vmatpush1.msra.mxu0 0.0
    %258 = vmatprep.subr.mxu0 0.0
    %259 = vmatpush1.msra.mxu0 0.0
    %260 = vmatprep.mubr.f32.mxu0 0.0
    %v261 = vand.u32 %v184, 4294901760
    %v262 = vsub.f32 %v184, %v261
    %v263 = vand.u32 %v262, 4294901760
    %v264 = vsub.f32 %v262, %v263
    %v265 = vand.u32 %v264, 4294901760
    %266 = vmatmul.mubr.f32.gmra.mrb[0].mxu0 %v265
    %v267 = vpop.f32.mrb[0].mxu0
    %v268 = vadd.f32 %v181, %v267
    %v269 = vpop.f32.mrb[0].mxu0
    %270 = vmatprep.mubr.f32.mxu0 0.0
    %v271 = vand.u32 %v187, 4294901760
    %v272 = vsub.f32 %v187, %v271
    %v273 = vand.u32 %v272, 4294901760
    %v274 = vsub.f32 %v272, %v273
    %v275 = vand.u32 %v274, 4294901760
    %276 = vmatmul.mubr.f32.gmra.mrb[0].mxu0 %v275
    %v277 = vpop.f32.mrb[0].mxu0
    %v278 = vadd.f32 %v181, %v277
    %v279 = vpop.f32.mrb[0].mxu0
    %280 = vmatprep.mubr.f32.mxu0 0.0
    %v281 = vand.u32 %v190, 4294901760
    %v282 = vsub.f32 %v190, %v281
    %v283 = vand.u32 %v282, 4294901760
    %v284 = vsub.f32 %v282, %v283
    %v285 = vand.u32 %v284, 4294901760
    %286 = vmatmul.mubr.f32.gmra.mrb[0].mxu0 %v285
    %v287 = vpop.f32.mrb[0].mxu0
    %v288 = vadd.f32 %v181, %v287
    %v289 = vpop.f32.mrb[0].mxu0
    %290 = vmatprep.mubr.f32.mxu0 0.0
    %v291 = vand.u32 %v193, 4294901760
    %v292 = vsub.f32 %v193, %v291
    %v293 = vand.u32 %v292, 4294901760
    %v294 = vsub.f32 %v292, %v293
    %v295 = vand.u32 %v294, 4294901760
    %296 = vmatmul.mubr.f32.gmra.mrb[0].mxu0 %v295
    %v297 = vpop.f32.mrb[0].mxu0
    %v298 = vadd.f32 %v181, %v297
    %v299 = vpop.f32.mrb[0].mxu0
    %300 = vdwg.mxu0
    %301 = vmatprep.subr.mxu0 0.0
    %v302 = vand.u32 %v175, 4294901760
    %v303 = vsub.f32 %v175, %v302
    %v304 = vand.u32 %v303, 4294901760
    %v305 = vsub.f32 %v303, %v304
    %v306 = vand.u32 %v305, 4294901760
    %307 = vmatpush1.msra.mxu0 %v306
    %308 = vmatprep.subr.mxu0 0.0
    %309 = vmatpush1.msra.mxu0 0.0
    %310 = vmatprep.subr.mxu0 0.0
    %311 = vmatpush1.msra.mxu0 0.0
    %312 = vmatprep.subr.mxu0 0.0
    %313 = vmatpush1.msra.mxu0 0.0
    %314 = vmatprep.subr.mxu0 0.0
    %315 = vmatpush1.msra.mxu0 0.0
    %316 = vmatprep.subr.mxu0 0.0
    %317 = vmatpush1.msra.mxu0 0.0
    %318 = vmatprep.subr.mxu0 0.0
    %319 = vmatpush1.msra.mxu0 0.0
    %320 = vmatprep.subr.mxu0 0.0
    %321 = vmatpush1.msra.mxu0 0.0
    %322 = vmatprep.subr.mxu0 0.0
    %323 = vmatpush1.msra.mxu0 0.0
    %324 = vmatprep.subr.mxu0 0.0
    %325 = vmatpush1.msra.mxu0 0.0
    %326 = vmatprep.subr.mxu0 0.0
    %327 = vmatpush1.msra.mxu0 0.0
    %328 = vmatprep.subr.mxu0 0.0
    %329 = vmatpush1.msra.mxu0 0.0
    %330 = vmatprep.subr.mxu0 0.0
    %331 = vmatpush1.msra.mxu0 0.0
    %332 = vmatprep.subr.mxu0 0.0
    %333 = vmatpush1.msra.mxu0 0.0
    %334 = vmatprep.subr.mxu0 0.0
    %335 = vmatpush1.msra.mxu0 0.0
    %336 = vmatprep.subr.mxu0 0.0
    %337 = vmatpush1.msra.mxu0 0.0
    %338 = vmatprep.subr.mxu0 0.0
    %339 = vmatpush1.msra.mxu0 0.0
    %340 = vmatprep.subr.mxu0 0.0
    %341 = vmatpush1.msra.mxu0 0.0
    %342 = vmatprep.subr.mxu0 0.0
    %343 = vmatpush1.msra.mxu0 0.0
    %344 = vmatprep.subr.mxu0 0.0
    %345 = vmatpush1.msra.mxu0 0.0
    %346 = vmatprep.subr.mxu0 0.0
    %347 = vmatpush1.msra.mxu0 0.0
    %348 = vmatprep.subr.mxu0 0.0
    %349 = vmatpush1.msra.mxu0 0.0
    %350 = vmatprep.subr.mxu0 0.0
    %351 = vmatpush1.msra.mxu0 0.0
    %352 = vmatprep.subr.mxu0 0.0
    %353 = vmatpush1.msra.mxu0 0.0
    %354 = vmatprep.subr.mxu0 0.0
    %355 = vmatpush1.msra.mxu0 0.0
    %356 = vmatprep.subr.mxu0 0.0
    %357 = vmatpush1.msra.mxu0 0.0
    %358 = vmatprep.subr.mxu0 0.0
    %359 = vmatpush1.msra.mxu0 0.0
    %360 = vmatprep.subr.mxu0 0.0
    %361 = vmatpush1.msra.mxu0 0.0
    %362 = vmatprep.subr.mxu0 0.0
    %363 = vmatpush1.msra.mxu0 0.0
    %364 = vmatprep.subr.mxu0 0.0
    %365 = vmatpush1.msra.mxu0 0.0
    %366 = vmatprep.subr.mxu0 0.0
    %367 = vmatpush1.msra.mxu0 0.0
    %368 = vmatprep.subr.mxu0 0.0
    %369 = vmatpush1.msra.mxu0 0.0
    %370 = vmatprep.mubr.f32.mxu0 0.0
    %v371 = vand.u32 %v184, 4294901760
    %372 = vmatmul.mubr.f32.gmra.mrb[0].mxu0 %v371
    %v373 = vpop.f32.mrb[0].mxu0
    %v374 = vadd.f32 %v268, %v373
    %v375 = vpop.f32.mrb[0].mxu0
    %376 = vmatprep.mubr.f32.mxu0 0.0
    %v377 = vand.u32 %v187, 4294901760
    %378 = vmatmul.mubr.f32.gmra.mrb[0].mxu0 %v377
    %v379 = vpop.f32.mrb[0].mxu0
    %v380 = vadd.f32 %v278, %v379
    %v381 = vpop.f32.mrb[0].mxu0
    %382 = vmatprep.mubr.f32.mxu0 0.0
    %v383 = vand.u32 %v190, 4294901760
    %384 = vmatmul.mubr.f32.gmra.mrb[0].mxu0 %v383
    %v385 = vpop.f32.mrb[0].mxu0
    %v386 = vadd.f32 %v288, %v385
    %v387 = vpop.f32.mrb[0].mxu0
    %388 = vmatprep.mubr.f32.mxu0 0.0
    %v389 = vand.u32 %v193, 4294901760
    %390 = vmatmul.mubr.f32.gmra.mrb[0].mxu0 %v389
    %v391 = vpop.f32.mrb[0].mxu0
    %v392 = vadd.f32 %v298, %v391
    %v393 = vpop.f32.mrb[0].mxu0
    %394 = vdwg.mxu0
    %395 = vmatprep.subr.mxu0 0.0
    %v396 = vand.u32 %v175, 4294901760
    %v397 = vsub.f32 %v175, %v396
    %398 = vmatpush1.msra.mxu0 %v397
    %399 = vmatprep.subr.mxu0 0.0
    %400 = vmatpush1.msra.mxu0 0.0
    %401 = vmatprep.subr.mxu0 0.0
    %402 = vmatpush1.msra.mxu0 0.0
    %403 = vmatprep.subr.mxu0 0.0
    %404 = vmatpush1.msra.mxu0 0.0
    %405 = vmatprep.subr.mxu0 0.0
    %406 = vmatpush1.msra.mxu0 0.0
    %407 = vmatprep.subr.mxu0 0.0
    %408 = vmatpush1.msra.mxu0 0.0
    %409 = vmatprep.subr.mxu0 0.0
    %410 = vmatpush1.msra.mxu0 0.0
    %411 = vmatprep.subr.mxu0 0.0
    %412 = vmatpush1.msra.mxu0 0.0
    %413 = vmatprep.subr.mxu0 0.0
    %414 = vmatpush1.msra.mxu0 0.0
    %415 = vmatprep.subr.mxu0 0.0
    %416 = vmatpush1.msra.mxu0 0.0
    %417 = vmatprep.subr.mxu0 0.0
    %418 = vmatpush1.msra.mxu0 0.0
    %419 = vmatprep.subr.mxu0 0.0
    %420 = vmatpush1.msra.mxu0 0.0
    %421 = vmatprep.subr.mxu0 0.0
    %422 = vmatpush1.msra.mxu0 0.0
    %423 = vmatprep.subr.mxu0 0.0
    %424 = vmatpush1.msra.mxu0 0.0
    %425 = vmatprep.subr.mxu0 0.0
    %426 = vmatpush1.msra.mxu0 0.0
    %427 = vmatprep.subr.mxu0 0.0
    %428 = vmatpush1.msra.mxu0 0.0
    %429 = vmatprep.subr.mxu0 0.0
    %430 = vmatpush1.msra.mxu0 0.0
    %431 = vmatprep.subr.mxu0 0.0
    %432 = vmatpush1.msra.mxu0 0.0
    %433 = vmatprep.subr.mxu0 0.0
    %434 = vmatpush1.msra.mxu0 0.0
    %435 = vmatprep.subr.mxu0 0.0
    %436 = vmatpush1.msra.mxu0 0.0
    %437 = vmatprep.subr.mxu0 0.0
    %438 = vmatpush1.msra.mxu0 0.0
    %439 = vmatprep.subr.mxu0 0.0
    %440 = vmatpush1.msra.mxu0 0.0
    %441 = vmatprep.subr.mxu0 0.0
    %442 = vmatpush1.msra.mxu0 0.0
    %443 = vmatprep.subr.mxu0 0.0
    %444 = vmatpush1.msra.mxu0 0.0
    %445 = vmatprep.subr.mxu0 0.0
    %446 = vmatpush1.msra.mxu0 0.0
    %447 = vmatprep.subr.mxu0 0.0
    %448 = vmatpush1.msra.mxu0 0.0
    %449 = vmatprep.subr.mxu0 0.0
    %450 = vmatpush1.msra.mxu0 0.0
    %451 = vmatprep.subr.mxu0 0.0
    %452 = vmatpush1.msra.mxu0 0.0
    %453 = vmatprep.subr.mxu0 0.0
    %454 = vmatpush1.msra.mxu0 0.0
    %455 = vmatprep.subr.mxu0 0.0
    %456 = vmatpush1.msra.mxu0 0.0
    %457 = vmatprep.subr.mxu0 0.0
    %458 = vmatpush1.msra.mxu0 0.0
    %459 = vmatprep.subr.mxu0 0.0
    %460 = vmatpush1.msra.mxu0 0.0
    %461 = vmatprep.mubr.f32.mxu0 0.0
    %v462 = vand.u32 %v184, 4294901760
    %v463 = vsub.f32 %v184, %v462
    %464 = vmatmul.mubr.f32.gmra.mrb[0].mxu0 %v463
    %v465 = vpop.f32.mrb[0].mxu0
    %v466 = vadd.f32 %v374, %v465
    %v467 = vpop.f32.mrb[0].mxu0
    %468 = vmatprep.mubr.f32.mxu0 0.0
    %v469 = vand.u32 %v187, 4294901760
    %v470 = vsub.f32 %v187, %v469
    %471 = vmatmul.mubr.f32.gmra.mrb[0].mxu0 %v470
    %v472 = vpop.f32.mrb[0].mxu0
    %v473 = vadd.f32 %v380, %v472
    %v474 = vpop.f32.mrb[0].mxu0
    %475 = vmatprep.mubr.f32.mxu0 0.0
    %v476 = vand.u32 %v190, 4294901760
    %v477 = vsub.f32 %v190, %v476
    %478 = vmatmul.mubr.f32.gmra.mrb[0].mxu0 %v477
    %v479 = vpop.f32.mrb[0].mxu0
    %v480 = vadd.f32 %v386, %v479
    %v481 = vpop.f32.mrb[0].mxu0
    %482 = vmatprep.mubr.f32.mxu0 0.0
    %v483 = vand.u32 %v193, 4294901760
    %v484 = vsub.f32 %v193, %v483
    %485 = vmatmul.mubr.f32.gmra.mrb[0].mxu0 %v484
    %v486 = vpop.f32.mrb[0].mxu0
    %v487 = vadd.f32 %v392, %v486
    %v488 = vpop.f32.mrb[0].mxu0
    %489 = vdwg.mxu0
    %490 = vmatprep.subr.mxu0 0.0
    %v491 = vand.u32 %v175, 4294901760
    %492 = vmatpush1.msra.mxu0 %v491
    %493 = vmatprep.subr.mxu0 0.0
    %494 = vmatpush1.msra.mxu0 0.0
    %495 = vmatprep.subr.mxu0 0.0
    %496 = vmatpush1.msra.mxu0 0.0
    %497 = vmatprep.subr.mxu0 0.0
    %498 = vmatpush1.msra.mxu0 0.0
    %499 = vmatprep.subr.mxu0 0.0
    %500 = vmatpush1.msra.mxu0 0.0
    %501 = vmatprep.subr.mxu0 0.0
    %502 = vmatpush1.msra.mxu0 0.0
    %503 = vmatprep.subr.mxu0 0.0
    %504 = vmatpush1.msra.mxu0 0.0
    %505 = vmatprep.subr.mxu0 0.0
    %506 = vmatpush1.msra.mxu0 0.0
    %507 = vmatprep.subr.mxu0 0.0
    %508 = vmatpush1.msra.mxu0 0.0
    %509 = vmatprep.subr.mxu0 0.0
    %510 = vmatpush1.msra.mxu0 0.0
    %511 = vmatprep.subr.mxu0 0.0
    %512 = vmatpush1.msra.mxu0 0.0
    %513 = vmatprep.subr.mxu0 0.0
    %514 = vmatpush1.msra.mxu0 0.0
    %515 = vmatprep.subr.mxu0 0.0
    %516 = vmatpush1.msra.mxu0 0.0
    %517 = vmatprep.subr.mxu0 0.0
    %518 = vmatpush1.msra.mxu0 0.0
    %519 = vmatprep.subr.mxu0 0.0
    %520 = vmatpush1.msra.mxu0 0.0
    %521 = vmatprep.subr.mxu0 0.0
    %522 = vmatpush1.msra.mxu0 0.0
    %523 = vmatprep.subr.mxu0 0.0
    %524 = vmatpush1.msra.mxu0 0.0
    %525 = vmatprep.subr.mxu0 0.0
    %526 = vmatpush1.msra.mxu0 0.0
    %527 = vmatprep.subr.mxu0 0.0
    %528 = vmatpush1.msra.mxu0 0.0
    %529 = vmatprep.subr.mxu0 0.0
    %530 = vmatpush1.msra.mxu0 0.0
    %531 = vmatprep.subr.mxu0 0.0
    %532 = vmatpush1.msra.mxu0 0.0
    %533 = vmatprep.subr.mxu0 0.0
    %534 = vmatpush1.msra.mxu0 0.0
    %535 = vmatprep.subr.mxu0 0.0
    %536 = vmatpush1.msra.mxu0 0.0
    %537 = vmatprep.subr.mxu0 0.0
    %538 = vmatpush1.msra.mxu0 0.0
    %539 = vmatprep.subr.mxu0 0.0
    %540 = vmatpush1.msra.mxu0 0.0
    %541 = vmatprep.subr.mxu0 0.0
    %542 = vmatpush1.msra.mxu0 0.0
    %543 = vmatprep.subr.mxu0 0.0
    %544 = vmatpush1.msra.mxu0 0.0
    %545 = vmatprep.subr.mxu0 0.0
    %546 = vmatpush1.msra.mxu0 0.0
    %547 = vmatprep.subr.mxu0 0.0
    %548 = vmatpush1.msra.mxu0 0.0
    %549 = vmatprep.subr.mxu0 0.0
    %550 = vmatpush1.msra.mxu0 0.0
    %551 = vmatprep.subr.mxu0 0.0
    %552 = vmatpush1.msra.mxu0 0.0
    %553 = vmatprep.subr.mxu0 0.0
    %554 = vmatpush1.msra.mxu0 0.0
    %555 = vmatprep.mubr.f32.mxu0 0.0
    %v556 = vand.u32 %v184, 4294901760
    %v557 = vsub.f32 %v184, %v556
    %v558 = vand.u32 %v557, 4294901760
    %559 = vmatmul.mubr.f32.gmra.mrb[0].mxu0 %v558
    %v560 = vpop.f32.mrb[0].mxu0
    %v561 = vadd.f32 %v466, %v560
    %v562 = vpop.f32.mrb[0].mxu0
    %563 = vmatprep.mubr.f32.mxu0 0.0
    %v564 = vand.u32 %v187, 4294901760
    %v565 = vsub.f32 %v187, %v564
    %v566 = vand.u32 %v565, 4294901760
    %567 = vmatmul.mubr.f32.gmra.mrb[0].mxu0 %v566
    %v568 = vpop.f32.mrb[0].mxu0
    %v569 = vadd.f32 %v473, %v568
    %v570 = vpop.f32.mrb[0].mxu0
    %571 = vmatprep.mubr.f32.mxu0 0.0
    %v572 = vand.u32 %v190, 4294901760
    %v573 = vsub.f32 %v190, %v572
    %v574 = vand.u32 %v573, 4294901760
    %575 = vmatmul.mubr.f32.gmra.mrb[0].mxu0 %v574
    %v576 = vpop.f32.mrb[0].mxu0
    %v577 = vadd.f32 %v480, %v576
    %v578 = vpop.f32.mrb[0].mxu0
    %579 = vmatprep.mubr.f32.mxu0 0.0
    %v580 = vand.u32 %v193, 4294901760
    %v581 = vsub.f32 %v193, %v580
    %v582 = vand.u32 %v581, 4294901760
    %583 = vmatmul.mubr.f32.gmra.mrb[0].mxu0 %v582
    %v584 = vpop.f32.mrb[0].mxu0
    %v585 = vadd.f32 %v487, %v584
    %v586 = vpop.f32.mrb[0].mxu0
    %587 = vdwg.mxu0
    %588 = vmatprep.subr.mxu0 0.0
    %v589 = vand.u32 %v175, 4294901760
    %v590 = vsub.f32 %v175, %v589
    %v591 = vand.u32 %v590, 4294901760
    %592 = vmatpush1.msra.mxu0 %v591
    %593 = vmatprep.subr.mxu0 0.0
    %594 = vmatpush1.msra.mxu0 0.0
    %595 = vmatprep.subr.mxu0 0.0
    %596 = vmatpush1.msra.mxu0 0.0
    %597 = vmatprep.subr.mxu0 0.0
    %598 = vmatpush1.msra.mxu0 0.0
    %599 = vmatprep.subr.mxu0 0.0
    %600 = vmatpush1.msra.mxu0 0.0
    %601 = vmatprep.subr.mxu0 0.0
    %602 = vmatpush1.msra.mxu0 0.0
    %603 = vmatprep.subr.mxu0 0.0
    %604 = vmatpush1.msra.mxu0 0.0
    %605 = vmatprep.subr.mxu0 0.0
    %606 = vmatpush1.msra.mxu0 0.0
    %607 = vmatprep.subr.mxu0 0.0
    %608 = vmatpush1.msra.mxu0 0.0
    %609 = vmatprep.subr.mxu0 0.0
    %610 = vmatpush1.msra.mxu0 0.0
    %611 = vmatprep.subr.mxu0 0.0
    %612 = vmatpush1.msra.mxu0 0.0
    %613 = vmatprep.subr.mxu0 0.0
    %614 = vmatpush1.msra.mxu0 0.0
    %615 = vmatprep.subr.mxu0 0.0
    %616 = vmatpush1.msra.mxu0 0.0
    %617 = vmatprep.subr.mxu0 0.0
    %618 = vmatpush1.msra.mxu0 0.0
    %619 = vmatprep.subr.mxu0 0.0
    %620 = vmatpush1.msra.mxu0 0.0
    %621 = vmatprep.subr.mxu0 0.0
    %622 = vmatpush1.msra.mxu0 0.0
    %623 = vmatprep.subr.mxu0 0.0
    %624 = vmatpush1.msra.mxu0 0.0
    %625 = vmatprep.subr.mxu0 0.0
    %626 = vmatpush1.msra.mxu0 0.0
    %627 = vmatprep.subr.mxu0 0.0
    %628 = vmatpush1.msra.mxu0 0.0
    %629 = vmatprep.subr.mxu0 0.0
    %630 = vmatpush1.msra.mxu0 0.0
    %631 = vmatprep.subr.mxu0 0.0
    %632 = vmatpush1.msra.mxu0 0.0
    %633 = vmatprep.subr.mxu0 0.0
    %634 = vmatpush1.msra.mxu0 0.0
    %635 = vmatprep.subr.mxu0 0.0
    %636 = vmatpush1.msra.mxu0 0.0
    %637 = vmatprep.subr.mxu0 0.0
    %638 = vmatpush1.msra.mxu0 0.0
    %639 = vmatprep.subr.mxu0 0.0
    %640 = vmatpush1.msra.mxu0 0.0
    %641 = vmatprep.subr.mxu0 0.0
    %642 = vmatpush1.msra.mxu0 0.0
    %643 = vmatprep.subr.mxu0 0.0
    %644 = vmatpush1.msra.mxu0 0.0
    %645 = vmatprep.subr.mxu0 0.0
    %646 = vmatpush1.msra.mxu0 0.0
    %647 = vmatprep.subr.mxu0 0.0
    %648 = vmatpush1.msra.mxu0 0.0
    %649 = vmatprep.subr.mxu0 0.0
    %650 = vmatpush1.msra.mxu0 0.0
    %651 = vmatprep.subr.mxu0 0.0
    %652 = vmatpush1.msra.mxu0 0.0
    %653 = vmatprep.subr.mxu0 0.0
    %654 = vmatpush1.msra.mxu0 0.0
    %655 = vmatprep.mubr.f32.mxu0 0.0
    %v656 = vand.u32 %v184, 4294901760
    %657 = vmatmul.mubr.f32.gmra.mrb[0].mxu0 %v656
    %v658 = vpop.f32.mrb[0].mxu0
    %v659 = vadd.f32 %v561, %v658
    %v660 = vpop.f32.mrb[0].mxu0
    %661 = vmatprep.mubr.f32.mxu0 0.0
    %v662 = vand.u32 %v187, 4294901760
    %663 = vmatmul.mubr.f32.gmra.mrb[0].mxu0 %v662
    %v664 = vpop.f32.mrb[0].mxu0
    %v665 = vadd.f32 %v569, %v664
    %v666 = vpop.f32.mrb[0].mxu0
    %667 = vmatprep.mubr.f32.mxu0 0.0
    %v668 = vand.u32 %v190, 4294901760
    %669 = vmatmul.mubr.f32.gmra.mrb[0].mxu0 %v668
    %v670 = vpop.f32.mrb[0].mxu0
    %v671 = vadd.f32 %v577, %v670
    %v672 = vpop.f32.mrb[0].mxu0
    %673 = vmatprep.mubr.f32.mxu0 0.0
    %v674 = vand.u32 %v193, 4294901760
    %675 = vmatmul.mubr.f32.gmra.mrb[0].mxu0 %v674
    %v676 = vpop.f32.mrb[0].mxu0
    %v677 = vadd.f32 %v585, %v676
    %v678 = vpop.f32.mrb[0].mxu0
    %679 = vdwg.mxu0
    %680 = vmatprep.subr.mxu0 0.0
    %v681 = vand.u32 %v175, 4294901760
    %682 = vmatpush1.msra.mxu0 %v681
    %683 = vmatprep.subr.mxu0 0.0
    %684 = vmatpush1.msra.mxu0 0.0
    %685 = vmatprep.subr.mxu0 0.0
    %686 = vmatpush1.msra.mxu0 0.0
    %687 = vmatprep.subr.mxu0 0.0
    %688 = vmatpush1.msra.mxu0 0.0
    %689 = vmatprep.subr.mxu0 0.0
    %690 = vmatpush1.msra.mxu0 0.0
    %691 = vmatprep.subr.mxu0 0.0
    %692 = vmatpush1.msra.mxu0 0.0
    %693 = vmatprep.subr.mxu0 0.0
    %694 = vmatpush1.msra.mxu0 0.0
    %695 = vmatprep.subr.mxu0 0.0
    %696 = vmatpush1.msra.mxu0 0.0
    %697 = vmatprep.subr.mxu0 0.0
    %698 = vmatpush1.msra.mxu0 0.0
    %699 = vmatprep.subr.mxu0 0.0
    %700 = vmatpush1.msra.mxu0 0.0
    %701 = vmatprep.subr.mxu0 0.0
    %702 = vmatpush1.msra.mxu0 0.0
    %703 = vmatprep.subr.mxu0 0.0
    %704 = vmatpush1.msra.mxu0 0.0
    %705 = vmatprep.subr.mxu0 0.0
    %706 = vmatpush1.msra.mxu0 0.0
    %707 = vmatprep.subr.mxu0 0.0
    %708 = vmatpush1.msra.mxu0 0.0
    %709 = vmatprep.subr.mxu0 0.0
    %710 = vmatpush1.msra.mxu0 0.0
    %711 = vmatprep.subr.mxu0 0.0
    %712 = vmatpush1.msra.mxu0 0.0
    %713 = vmatprep.subr.mxu0 0.0
    %714 = vmatpush1.msra.mxu0 0.0
    %715 = vmatprep.subr.mxu0 0.0
    %716 = vmatpush1.msra.mxu0 0.0
    %717 = vmatprep.subr.mxu0 0.0
    %718 = vmatpush1.msra.mxu0 0.0
    %719 = vmatprep.subr.mxu0 0.0
    %720 = vmatpush1.msra.mxu0 0.0
    %721 = vmatprep.subr.mxu0 0.0
    %722 = vmatpush1.msra.mxu0 0.0
    %723 = vmatprep.subr.mxu0 0.0
    %724 = vmatpush1.msra.mxu0 0.0
    %725 = vmatprep.subr.mxu0 0.0
    %726 = vmatpush1.msra.mxu0 0.0
    %727 = vmatprep.subr.mxu0 0.0
    %728 = vmatpush1.msra.mxu0 0.0
    %729 = vmatprep.subr.mxu0 0.0
    %730 = vmatpush1.msra.mxu0 0.0
    %731 = vmatprep.subr.mxu0 0.0
    %732 = vmatpush1.msra.mxu0 0.0
    %733 = vmatprep.subr.mxu0 0.0
    %734 = vmatpush1.msra.mxu0 0.0
    %735 = vmatprep.subr.mxu0 0.0
    %736 = vmatpush1.msra.mxu0 0.0
    %737 = vmatprep.subr.mxu0 0.0
    %738 = vmatpush1.msra.mxu0 0.0
    %739 = vmatprep.subr.mxu0 0.0
    %740 = vmatpush1.msra.mxu0 0.0
    %741 = vmatprep.subr.mxu0 0.0
    %742 = vmatpush1.msra.mxu0 0.0
    %743 = vmatprep.subr.mxu0 0.0
    %744 = vmatpush1.msra.mxu0 0.0
    %745 = vmatprep.mubr.f32.mxu0 0.0
    %v746 = vand.u32 %v184, 4294901760
    %747 = vmatmul.mubr.f32.gmra.mrb[0].mxu0 %v746
    %v748 = vpop.f32.mrb[0].mxu0
    %v749 = vadd.f32 %v659, %v748
    %v750 = vpop.f32.mrb[0].mxu0
    %751 = vmatprep.mubr.f32.mxu0 0.0
    %v752 = vand.u32 %v187, 4294901760
    %753 = vmatmul.mubr.f32.gmra.mrb[0].mxu0 %v752
    %v754 = vpop.f32.mrb[0].mxu0
    %v755 = vadd.f32 %v665, %v754
    %v756 = vpop.f32.mrb[0].mxu0
    %757 = vmatprep.mubr.f32.mxu0 0.0
    %v758 = vand.u32 %v190, 4294901760
    %759 = vmatmul.mubr.f32.gmra.mrb[0].mxu0 %v758
    %v760 = vpop.f32.mrb[0].mxu0
    %v761 = vadd.f32 %v671, %v760
    %v762 = vpop.f32.mrb[0].mxu0
    %763 = vmatprep.mubr.f32.mxu0 0.0
    %v764 = vand.u32 %v193, 4294901760
    %765 = vmatmul.mubr.f32.gmra.mrb[0].mxu0 %v764
    %v766 = vpop.f32.mrb[0].mxu0
    %v767 = vadd.f32 %v677, %v766
    %v768 = vpop.f32.mrb[0].mxu0
    %769 = vdwg.mxu0
    %v770 = vtanh.pop %v749
    %v771 = vtanh.pop %v755
    %v772 = vtanh.pop %v761
    %v773 = vtanh.pop %v767
    %v774 = vld [vmem:[%s5] sm:$0xff]
    %v775 = vld [vmem:[%s5 + $0x8] sm:$0xff]
    %v776 = vld [vmem:[%s5 + $0x10] sm:$0xff]
    %v777 = vld [vmem:[%s5 + $0x18] sm:$0xff]
    %v778 = vld [vmem:[%s6] sm:$0x1]
    %v780 = vlaneseq
    %v781 = vshrl.u32 %v780, 7
    %v782 = vsub.s32 0, %v781
    %v783 = vrot.slane %v778, %v782
    %vm785 = vcmask 261120
    %v787 = vsel %vm785, %v770, 0
    %v790 = vsel %vm785, %v771, 0
    %v793 = vsel %vm785, %v772, 0
    %v796 = vsel %vm785, %v773, 0
    %798 = vmatprep.subr.mxu0 0.0
    %v799 = vand.u32 %v774, 4294901760
    %800 = vmatpush1.msra.mxu0 %v799
    %801 = vmatprep.subr.mxu0 0.0
    %v802 = vand.u32 %v775, 4294901760
    %803 = vmatpush1.msra.mxu0 %v802
    %804 = vmatprep.subr.mxu0 0.0
    %v805 = vand.u32 %v776, 4294901760
    %806 = vmatpush1.msra.mxu0 %v805
    %807 = vmatprep.subr.mxu0 0.0
    %v808 = vand.u32 %v777, 4294901760
    %809 = vmatpush1.msra.mxu0 %v808
    %810 = vmatprep.subr.mxu0 0.0
    %811 = vmatpush1.msra.mxu0 0.0
    %812 = vmatprep.subr.mxu0 0.0
    %813 = vmatpush1.msra.mxu0 0.0
    %814 = vmatprep.subr.mxu0 0.0
    %815 = vmatpush1.msra.mxu0 0.0
    %816 = vmatprep.subr.mxu0 0.0
    %817 = vmatpush1.msra.mxu0 0.0
    %818 = vmatprep.subr.mxu0 0.0
    %819 = vmatpush1.msra.mxu0 0.0
    %820 = vmatprep.subr.mxu0 0.0
    %821 = vmatpush1.msra.mxu0 0.0
    %822 = vmatprep.subr.mxu0 0.0
    %823 = vmatpush1.msra.mxu0 0.0
    %824 = vmatprep.subr.mxu0 0.0
    %825 = vmatpush1.msra.mxu0 0.0
    %826 = vmatprep.subr.mxu0 0.0
    %827 = vmatpush1.msra.mxu0 0.0
    %828 = vmatprep.subr.mxu0 0.0
    %829 = vmatpush1.msra.mxu0 0.0
    %830 = vmatprep.subr.mxu0 0.0
    %831 = vmatpush1.msra.mxu0 0.0
    %832 = vmatprep.subr.mxu0 0.0
    %833 = vmatpush1.msra.mxu0 0.0
    %834 = vmatprep.subr.mxu0 0.0
    %835 = vmatpush1.msra.mxu0 0.0
    %836 = vmatprep.subr.mxu0 0.0
    %837 = vmatpush1.msra.mxu0 0.0
    %838 = vmatprep.subr.mxu0 0.0
    %839 = vmatpush1.msra.mxu0 0.0
    %840 = vmatprep.subr.mxu0 0.0
    %841 = vmatpush1.msra.mxu0 0.0
    %842 = vmatprep.subr.mxu0 0.0
    %843 = vmatpush1.msra.mxu0 0.0
    %844 = vmatprep.subr.mxu0 0.0
    %845 = vmatpush1.msra.mxu0 0.0
    %846 = vmatprep.subr.mxu0 0.0
    %847 = vmatpush1.msra.mxu0 0.0
    %848 = vmatprep.subr.mxu0 0.0
    %849 = vmatpush1.msra.mxu0 0.0
    %850 = vmatprep.subr.mxu0 0.0
    %851 = vmatpush1.msra.mxu0 0.0
    %852 = vmatprep.subr.mxu0 0.0
    %853 = vmatpush1.msra.mxu0 0.0
    %854 = vmatprep.subr.mxu0 0.0
    %855 = vmatpush1.msra.mxu0 0.0
    %856 = vmatprep.subr.mxu0 0.0
    %857 = vmatpush1.msra.mxu0 0.0
    %858 = vmatprep.subr.mxu0 0.0
    %859 = vmatpush1.msra.mxu0 0.0
    %860 = vmatprep.subr.mxu0 0.0
    %861 = vmatpush1.msra.mxu0 0.0
    %862 = vmatprep.subr.mxu0 0.0
    %863 = vmatpush1.msra.mxu0 0.0
    %864 = vmatprep.subr.mxu0 0.0
    %865 = vmatpush1.msra.mxu0 0.0
    %866 = vmatprep.mubr.f32.mxu0 0.0
    %v867 = vand.u32 %v787, 4294901760
    %v868 = vsub.f32 %v787, %v867
    %v869 = vand.u32 %v868, 4294901760
    %v870 = vsub.f32 %v868, %v869
    %v871 = vand.u32 %v870, 4294901760
    %872 = vmatmul.mubr.f32.gmra.mrb[0].mxu0 %v871
    %v873 = vpop.f32.mrb[0].mxu0
    %v874 = vadd.f32 %v783, %v873
    %v875 = vpop.f32.mrb[0].mxu0
    %876 = vmatprep.mubr.f32.mxu0 0.0
    %v877 = vand.u32 %v790, 4294901760
    %v878 = vsub.f32 %v790, %v877
    %v879 = vand.u32 %v878, 4294901760
    %v880 = vsub.f32 %v878, %v879
    %v881 = vand.u32 %v880, 4294901760
    %882 = vmatmul.mubr.f32.gmra.mrb[0].mxu0 %v881
    %v883 = vpop.f32.mrb[0].mxu0
    %v884 = vadd.f32 %v783, %v883
    %v885 = vpop.f32.mrb[0].mxu0
    %886 = vmatprep.mubr.f32.mxu0 0.0
    %v887 = vand.u32 %v793, 4294901760
    %v888 = vsub.f32 %v793, %v887
    %v889 = vand.u32 %v888, 4294901760
    %v890 = vsub.f32 %v888, %v889
    %v891 = vand.u32 %v890, 4294901760
    %892 = vmatmul.mubr.f32.gmra.mrb[0].mxu0 %v891
    %v893 = vpop.f32.mrb[0].mxu0
    %v894 = vadd.f32 %v783, %v893
    %v895 = vpop.f32.mrb[0].mxu0
    %896 = vmatprep.mubr.f32.mxu0 0.0
    %v897 = vand.u32 %v796, 4294901760
    %v898 = vsub.f32 %v796, %v897
    %v899 = vand.u32 %v898, 4294901760
    %v900 = vsub.f32 %v898, %v899
    %v901 = vand.u32 %v900, 4294901760
    %902 = vmatmul.mubr.f32.gmra.mrb[0].mxu0 %v901
    %v903 = vpop.f32.mrb[0].mxu0
    %v904 = vadd.f32 %v783, %v903
    %v905 = vpop.f32.mrb[0].mxu0
    %906 = vdwg.mxu0
    %907 = vmatprep.subr.mxu0 0.0
    %v908 = vand.u32 %v774, 4294901760
    %v909 = vsub.f32 %v774, %v908
    %v910 = vand.u32 %v909, 4294901760
    %v911 = vsub.f32 %v909, %v910
    %v912 = vand.u32 %v911, 4294901760
    %913 = vmatpush1.msra.mxu0 %v912
    %914 = vmatprep.subr.mxu0 0.0
    %v915 = vand.u32 %v775, 4294901760
    %v916 = vsub.f32 %v775, %v915
    %v917 = vand.u32 %v916, 4294901760
    %v918 = vsub.f32 %v916, %v917
    %v919 = vand.u32 %v918, 4294901760
    %920 = vmatpush1.msra.mxu0 %v919
    %921 = vmatprep.subr.mxu0 0.0
    %v922 = vand.u32 %v776, 4294901760
    %v923 = vsub.f32 %v776, %v922
    %v924 = vand.u32 %v923, 4294901760
    %v925 = vsub.f32 %v923, %v924
    %v926 = vand.u32 %v925, 4294901760
    %927 = vmatpush1.msra.mxu0 %v926
    %928 = vmatprep.subr.mxu0 0.0
    %v929 = vand.u32 %v777, 4294901760
    %v930 = vsub.f32 %v777, %v929
    %v931 = vand.u32 %v930, 4294901760
    %v932 = vsub.f32 %v930, %v931
    %v933 = vand.u32 %v932, 4294901760
    %934 = vmatpush1.msra.mxu0 %v933
    %935 = vmatprep.subr.mxu0 0.0
    %936 = vmatpush1.msra.mxu0 0.0
    %937 = vmatprep.subr.mxu0 0.0
    %938 = vmatpush1.msra.mxu0 0.0
    %939 = vmatprep.subr.mxu0 0.0
    %940 = vmatpush1.msra.mxu0 0.0
    %941 = vmatprep.subr.mxu0 0.0
    %942 = vmatpush1.msra.mxu0 0.0
    %943 = vmatprep.subr.mxu0 0.0
    %944 = vmatpush1.msra.mxu0 0.0
    %945 = vmatprep.subr.mxu0 0.0
    %946 = vmatpush1.msra.mxu0 0.0
    %947 = vmatprep.subr.mxu0 0.0
    %948 = vmatpush1.msra.mxu0 0.0
    %949 = vmatprep.subr.mxu0 0.0
    %950 = vmatpush1.msra.mxu0 0.0
    %951 = vmatprep.subr.mxu0 0.0
    %952 = vmatpush1.msra.mxu0 0.0
    %953 = vmatprep.subr.mxu0 0.0
    %954 = vmatpush1.msra.mxu0 0.0
    %955 = vmatprep.subr.mxu0 0.0
    %956 = vmatpush1.msra.mxu0 0.0
    %957 = vmatprep.subr.mxu0 0.0
    %958 = vmatpush1.msra.mxu0 0.0
    %959 = vmatprep.subr.mxu0 0.0
    %960 = vmatpush1.msra.mxu0 0.0
    %961 = vmatprep.subr.mxu0 0.0
    %962 = vmatpush1.msra.mxu0 0.0
    %963 = vmatprep.subr.mxu0 0.0
    %964 = vmatpush1.msra.mxu0 0.0
    %965 = vmatprep.subr.mxu0 0.0
    %966 = vmatpush1.msra.mxu0 0.0
    %967 = vmatprep.subr.mxu0 0.0
    %968 = vmatpush1.msra.mxu0 0.0
    %969 = vmatprep.subr.mxu0 0.0
    %970 = vmatpush1.msra.mxu0 0.0
    %971 = vmatprep.subr.mxu0 0.0
    %972 = vmatpush1.msra.mxu0 0.0
    %973 = vmatprep.subr.mxu0 0.0
    %974 = vmatpush1.msra.mxu0 0.0
    %975 = vmatprep.subr.mxu0 0.0
    %976 = vmatpush1.msra.mxu0 0.0
    %977 = vmatprep.subr.mxu0 0.0
    %978 = vmatpush1.msra.mxu0 0.0
    %979 = vmatprep.subr.mxu0 0.0
    %980 = vmatpush1.msra.mxu0 0.0
    %981 = vmatprep.subr.mxu0 0.0
    %982 = vmatpush1.msra.mxu0 0.0
    %983 = vmatprep.subr.mxu0 0.0
    %984 = vmatpush1.msra.mxu0 0.0
    %985 = vmatprep.subr.mxu0 0.0
    %986 = vmatpush1.msra.mxu0 0.0
    %987 = vmatprep.subr.mxu0 0.0
    %988 = vmatpush1.msra.mxu0 0.0
    %989 = vmatprep.subr.mxu0 0.0
    %990 = vmatpush1.msra.mxu0 0.0
    %991 = vmatprep.mubr.f32.mxu0 0.0
    %v992 = vand.u32 %v787, 4294901760
    %993 = vmatmul.mubr.f32.gmra.mrb[0].mxu0 %v992
    %v994 = vpop.f32.mrb[0].mxu0
    %v995 = vadd.f32 %v874, %v994
    %v996 = vpop.f32.mrb[0].mxu0
    %997 = vmatprep.mubr.f32.mxu0 0.0
    %v998 = vand.u32 %v790, 4294901760
    %999 = vmatmul.mubr.f32.gmra.mrb[0].mxu0 %v998
    %v1000 = vpop.f32.mrb[0].mxu0
    %v1001 = vadd.f32 %v884, %v1000
    %v1002 = vpop.f32.mrb[0].mxu0
    %1003 = vmatprep.mubr.f32.mxu0 0.0
    %v1004 = vand.u32 %v793, 4294901760
    %1005 = vmatmul.mubr.f32.gmra.mrb[0].mxu0 %v1004
    %v1006 = vpop.f32.mrb[0].mxu0
    %v1007 = vadd.f32 %v894, %v1006
    %v1008 = vpop.f32.mrb[0].mxu0
    %1009 = vmatprep.mubr.f32.mxu0 0.0
    %v1010 = vand.u32 %v796, 4294901760
    %1011 = vmatmul.mubr.f32.gmra.mrb[0].mxu0 %v1010
    %v1012 = vpop.f32.mrb[0].mxu0
    %v1013 = vadd.f32 %v904, %v1012
    %v1014 = vpop.f32.mrb[0].mxu0
    %1015 = vdwg.mxu0
    %1016 = vmatprep.subr.mxu0 0.0
    %v1017 = vand.u32 %v774, 4294901760
    %v1018 = vsub.f32 %v774, %v1017
    %1019 = vmatpush1.msra.mxu0 %v1018
    %1020 = vmatprep.subr.mxu0 0.0
    %v1021 = vand.u32 %v775, 4294901760
    %v1022 = vsub.f32 %v775, %v1021
    %1023 = vmatpush1.msra.mxu0 %v1022
    %1024 = vmatprep.subr.mxu0 0.0
    %v1025 = vand.u32 %v776, 4294901760
    %v1026 = vsub.f32 %v776, %v1025
    %1027 = vmatpush1.msra.mxu0 %v1026
    %1028 = vmatprep.subr.mxu0 0.0
    %v1029 = vand.u32 %v777, 4294901760
    %v1030 = vsub.f32 %v777, %v1029
    %1031 = vmatpush1.msra.mxu0 %v1030
    %1032 = vmatprep.subr.mxu0 0.0
    %1033 = vmatpush1.msra.mxu0 0.0
    %1034 = vmatprep.subr.mxu0 0.0
    %1035 = vmatpush1.msra.mxu0 0.0
    %1036 = vmatprep.subr.mxu0 0.0
    %1037 = vmatpush1.msra.mxu0 0.0
    %1038 = vmatprep.subr.mxu0 0.0
    %1039 = vmatpush1.msra.mxu0 0.0
    %1040 = vmatprep.subr.mxu0 0.0
    %1041 = vmatpush1.msra.mxu0 0.0
    %1042 = vmatprep.subr.mxu0 0.0
    %1043 = vmatpush1.msra.mxu0 0.0
    %1044 = vmatprep.subr.mxu0 0.0
    %1045 = vmatpush1.msra.mxu0 0.0
    %1046 = vmatprep.subr.mxu0 0.0
    %1047 = vmatpush1.msra.mxu0 0.0
    %1048 = vmatprep.subr.mxu0 0.0
    %1049 = vmatpush1.msra.mxu0 0.0
    %1050 = vmatprep.subr.mxu0 0.0
    %1051 = vmatpush1.msra.mxu0 0.0
    %1052 = vmatprep.subr.mxu0 0.0
    %1053 = vmatpush1.msra.mxu0 0.0
    %1054 = vmatprep.subr.mxu0 0.0
    %1055 = vmatpush1.msra.mxu0 0.0
    %1056 = vmatprep.subr.mxu0 0.0
    %1057 = vmatpush1.msra.mxu0 0.0
    %1058 = vmatprep.subr.mxu0 0.0
    %1059 = vmatpush1.msra.mxu0 0.0
    %1060 = vmatprep.subr.mxu0 0.0
    %1061 = vmatpush1.msra.mxu0 0.0
    %1062 = vmatprep.subr.mxu0 0.0
    %1063 = vmatpush1.msra.mxu0 0.0
    %1064 = vmatprep.subr.mxu0 0.0
    %1065 = vmatpush1.msra.mxu0 0.0
    %1066 = vmatprep.subr.mxu0 0.0
    %1067 = vmatpush1.msra.mxu0 0.0
    %1068 = vmatprep.subr.mxu0 0.0
    %1069 = vmatpush1.msra.mxu0 0.0
    %1070 = vmatprep.subr.mxu0 0.0
    %1071 = vmatpush1.msra.mxu0 0.0
    %1072 = vmatprep.subr.mxu0 0.0
    %1073 = vmatpush1.msra.mxu0 0.0
    %1074 = vmatprep.subr.mxu0 0.0
    %1075 = vmatpush1.msra.mxu0 0.0
    %1076 = vmatprep.subr.mxu0 0.0
    %1077 = vmatpush1.msra.mxu0 0.0
    %1078 = vmatprep.subr.mxu0 0.0
    %1079 = vmatpush1.msra.mxu0 0.0
    %1080 = vmatprep.subr.mxu0 0.0
    %1081 = vmatpush1.msra.mxu0 0.0
    %1082 = vmatprep.subr.mxu0 0.0
    %1083 = vmatpush1.msra.mxu0 0.0
    %1084 = vmatprep.subr.mxu0 0.0
    %1085 = vmatpush1.msra.mxu0 0.0
    %1086 = vmatprep.subr.mxu0 0.0
    %1087 = vmatpush1.msra.mxu0 0.0
    %1088 = vmatprep.mubr.f32.mxu0 0.0
    %v1089 = vand.u32 %v787, 4294901760
    %v1090 = vsub.f32 %v787, %v1089
    %1091 = vmatmul.mubr.f32.gmra.mrb[0].mxu0 %v1090
    %v1092 = vpop.f32.mrb[0].mxu0
    %v1093 = vadd.f32 %v995, %v1092
    %v1094 = vpop.f32.mrb[0].mxu0
    %1095 = vmatprep.mubr.f32.mxu0 0.0
    %v1096 = vand.u32 %v790, 4294901760
    %v1097 = vsub.f32 %v790, %v1096
    %1098 = vmatmul.mubr.f32.gmra.mrb[0].mxu0 %v1097
    %v1099 = vpop.f32.mrb[0].mxu0
    %v1100 = vadd.f32 %v1001, %v1099
    %v1101 = vpop.f32.mrb[0].mxu0
    %1102 = vmatprep.mubr.f32.mxu0 0.0
    %v1103 = vand.u32 %v793, 4294901760
    %v1104 = vsub.f32 %v793, %v1103
    %1105 = vmatmul.mubr.f32.gmra.mrb[0].mxu0 %v1104
    %v1106 = vpop.f32.mrb[0].mxu0
    %v1107 = vadd.f32 %v1007, %v1106
    %v1108 = vpop.f32.mrb[0].mxu0
    %1109 = vmatprep.mubr.f32.mxu0 0.0
    %v1110 = vand.u32 %v796, 4294901760
    %v1111 = vsub.f32 %v796, %v1110
    %1112 = vmatmul.mubr.f32.gmra.mrb[0].mxu0 %v1111
    %v1113 = vpop.f32.mrb[0].mxu0
    %v1114 = vadd.f32 %v1013, %v1113
    %v1115 = vpop.f32.mrb[0].mxu0
    %1116 = vdwg.mxu0
    %1117 = vmatprep.subr.mxu0 0.0
    %v1118 = vand.u32 %v774, 4294901760
    %1119 = vmatpush1.msra.mxu0 %v1118
    %1120 = vmatprep.subr.mxu0 0.0
    %v1121 = vand.u32 %v775, 4294901760
    %1122 = vmatpush1.msra.mxu0 %v1121
    %1123 = vmatprep.subr.mxu0 0.0
    %v1124 = vand.u32 %v776, 4294901760
    %1125 = vmatpush1.msra.mxu0 %v1124
    %1126 = vmatprep.subr.mxu0 0.0
    %v1127 = vand.u32 %v777, 4294901760
    %1128 = vmatpush1.msra.mxu0 %v1127
    %1129 = vmatprep.subr.mxu0 0.0
    %1130 = vmatpush1.msra.mxu0 0.0
    %1131 = vmatprep.subr.mxu0 0.0
    %1132 = vmatpush1.msra.mxu0 0.0
    %1133 = vmatprep.subr.mxu0 0.0
    %1134 = vmatpush1.msra.mxu0 0.0
    %1135 = vmatprep.subr.mxu0 0.0
    %1136 = vmatpush1.msra.mxu0 0.0
    %1137 = vmatprep.subr.mxu0 0.0
    %1138 = vmatpush1.msra.mxu0 0.0
    %1139 = vmatprep.subr.mxu0 0.0
    %1140 = vmatpush1.msra.mxu0 0.0
    %1141 = vmatprep.subr.mxu0 0.0
    %1142 = vmatpush1.msra.mxu0 0.0
    %1143 = vmatprep.subr.mxu0 0.0
    %1144 = vmatpush1.msra.mxu0 0.0
    %1145 = vmatprep.subr.mxu0 0.0
    %1146 = vmatpush1.msra.mxu0 0.0
    %1147 = vmatprep.subr.mxu0 0.0
    %1148 = vmatpush1.msra.mxu0 0.0
    %1149 = vmatprep.subr.mxu0 0.0
    %1150 = vmatpush1.msra.mxu0 0.0
    %1151 = vmatprep.subr.mxu0 0.0
    %1152 = vmatpush1.msra.mxu0 0.0
    %1153 = vmatprep.subr.mxu0 0.0
    %1154 = vmatpush1.msra.mxu0 0.0
    %1155 = vmatprep.subr.mxu0 0.0
    %1156 = vmatpush1.msra.mxu0 0.0
    %1157 = vmatprep.subr.mxu0 0.0
    %1158 = vmatpush1.msra.mxu0 0.0
    %1159 = vmatprep.subr.mxu0 0.0
    %1160 = vmatpush1.msra.mxu0 0.0
    %1161 = vmatprep.subr.mxu0 0.0
    %1162 = vmatpush1.msra.mxu0 0.0
    %1163 = vmatprep.subr.mxu0 0.0
    %1164 = vmatpush1.msra.mxu0 0.0
    %1165 = vmatprep.subr.mxu0 0.0
    %1166 = vmatpush1.msra.mxu0 0.0
    %1167 = vmatprep.subr.mxu0 0.0
    %1168 = vmatpush1.msra.mxu0 0.0
    %1169 = vmatprep.subr.mxu0 0.0
    %1170 = vmatpush1.msra.mxu0 0.0
    %1171 = vmatprep.subr.mxu0 0.0
    %1172 = vmatpush1.msra.mxu0 0.0
    %1173 = vmatprep.subr.mxu0 0.0
    %1174 = vmatpush1.msra.mxu0 0.0
    %1175 = vmatprep.subr.mxu0 0.0
    %1176 = vmatpush1.msra.mxu0 0.0
    %1177 = vmatprep.subr.mxu0 0.0
    %1178 = vmatpush1.msra.mxu0 0.0
    %1179 = vmatprep.subr.mxu0 0.0
    %1180 = vmatpush1.msra.mxu0 0.0
    %1181 = vmatprep.subr.mxu0 0.0
    %1182 = vmatpush1.msra.mxu0 0.0
    %1183 = vmatprep.subr.mxu0 0.0
    %1184 = vmatpush1.msra.mxu0 0.0
    %1185 = vmatprep.mubr.f32.mxu0 0.0
    %v1186 = vand.u32 %v787, 4294901760
    %v1187 = vsub.f32 %v787, %v1186
    %v1188 = vand.u32 %v1187, 4294901760
    %1189 = vmatmul.mubr.f32.gmra.mrb[0].mxu0 %v1188
    %v1190 = vpop.f32.mrb[0].mxu0
    %v1191 = vadd.f32 %v1093, %v1190
    %v1192 = vpop.f32.mrb[0].mxu0
    %1193 = vmatprep.mubr.f32.mxu0 0.0
    %v1194 = vand.u32 %v790, 4294901760
    %v1195 = vsub.f32 %v790, %v1194
    %v1196 = vand.u32 %v1195, 4294901760
    %1197 = vmatmul.mubr.f32.gmra.mrb[0].mxu0 %v1196
    %v1198 = vpop.f32.mrb[0].mxu0
    %v1199 = vadd.f32 %v1100, %v1198
    %v1200 = vpop.f32.mrb[0].mxu0
    %1201 = vmatprep.mubr.f32.mxu0 0.0
    %v1202 = vand.u32 %v793, 4294901760
    %v1203 = vsub.f32 %v793, %v1202
    %v1204 = vand.u32 %v1203, 4294901760
    %1205 = vmatmul.mubr.f32.gmra.mrb[0].mxu0 %v1204
    %v1206 = vpop.f32.mrb[0].mxu0
    %v1207 = vadd.f32 %v1107, %v1206
    %v1208 = vpop.f32.mrb[0].mxu0
    %1209 = vmatprep.mubr.f32.mxu0 0.0
    %v1210 = vand.u32 %v796, 4294901760
    %v1211 = vsub.f32 %v796, %v1210
    %v1212 = vand.u32 %v1211, 4294901760
    %1213 = vmatmul.mubr.f32.gmra.mrb[0].mxu0 %v1212
    %v1214 = vpop.f32.mrb[0].mxu0
    %v1215 = vadd.f32 %v1114, %v1214
    %v1216 = vpop.f32.mrb[0].mxu0
    %1217 = vdwg.mxu0
    %1218 = vmatprep.subr.mxu0 0.0
    %v1219 = vand.u32 %v774, 4294901760
    %v1220 = vsub.f32 %v774, %v1219
    %v1221 = vand.u32 %v1220, 4294901760
    %1222 = vmatpush1.msra.mxu0 %v1221
    %1223 = vmatprep.subr.mxu0 0.0
    %v1224 = vand.u32 %v775, 4294901760
    %v1225 = vsub.f32 %v775, %v1224
    %v1226 = vand.u32 %v1225, 4294901760
    %1227 = vmatpush1.msra.mxu0 %v1226
    %1228 = vmatprep.subr.mxu0 0.0
    %v1229 = vand.u32 %v776, 4294901760
    %v1230 = vsub.f32 %v776, %v1229
    %v1231 = vand.u32 %v1230, 4294901760
    %1232 = vmatpush1.msra.mxu0 %v1231
    %1233 = vmatprep.subr.mxu0 0.0
    %v1234 = vand.u32 %v777, 4294901760
    %v1235 = vsub.f32 %v777, %v1234
    %v1236 = vand.u32 %v1235, 4294901760
    %1237 = vmatpush1.msra.mxu0 %v1236
    %1238 = vmatprep.subr.mxu0 0.0
    %1239 = vmatpush1.msra.mxu0 0.0
    %1240 = vmatprep.subr.mxu0 0.0
    %1241 = vmatpush1.msra.mxu0 0.0
    %1242 = vmatprep.subr.mxu0 0.0
    %1243 = vmatpush1.msra.mxu0 0.0
    %1244 = vmatprep.subr.mxu0 0.0
    %1245 = vmatpush1.msra.mxu0 0.0
    %1246 = vmatprep.subr.mxu0 0.0
    %1247 = vmatpush1.msra.mxu0 0.0
    %1248 = vmatprep.subr.mxu0 0.0
    %1249 = vmatpush1.msra.mxu0 0.0
    %1250 = vmatprep.subr.mxu0 0.0
    %1251 = vmatpush1.msra.mxu0 0.0
    %1252 = vmatprep.subr.mxu0 0.0
    %1253 = vmatpush1.msra.mxu0 0.0
    %1254 = vmatprep.subr.mxu0 0.0
    %1255 = vmatpush1.msra.mxu0 0.0
    %1256 = vmatprep.subr.mxu0 0.0
    %1257 = vmatpush1.msra.mxu0 0.0
    %1258 = vmatprep.subr.mxu0 0.0
    %1259 = vmatpush1.msra.mxu0 0.0
    %1260 = vmatprep.subr.mxu0 0.0
    %1261 = vmatpush1.msra.mxu0 0.0
    %1262 = vmatprep.subr.mxu0 0.0
    %1263 = vmatpush1.msra.mxu0 0.0
    %1264 = vmatprep.subr.mxu0 0.0
    %1265 = vmatpush1.msra.mxu0 0.0
    %1266 = vmatprep.subr.mxu0 0.0
    %1267 = vmatpush1.msra.mxu0 0.0
    %1268 = vmatprep.subr.mxu0 0.0
    %1269 = vmatpush1.msra.mxu0 0.0
    %1270 = vmatprep.subr.mxu0 0.0
    %1271 = vmatpush1.msra.mxu0 0.0
    %1272 = vmatprep.subr.mxu0 0.0
    %1273 = vmatpush1.msra.mxu0 0.0
    %1274 = vmatprep.subr.mxu0 0.0
    %1275 = vmatpush1.msra.mxu0 0.0
    %1276 = vmatprep.subr.mxu0 0.0
    %1277 = vmatpush1.msra.mxu0 0.0
    %1278 = vmatprep.subr.mxu0 0.0
    %1279 = vmatpush1.msra.mxu0 0.0
    %1280 = vmatprep.subr.mxu0 0.0
    %1281 = vmatpush1.msra.mxu0 0.0
    %1282 = vmatprep.subr.mxu0 0.0
    %1283 = vmatpush1.msra.mxu0 0.0
    %1284 = vmatprep.subr.mxu0 0.0
    %1285 = vmatpush1.msra.mxu0 0.0
    %1286 = vmatprep.subr.mxu0 0.0
    %1287 = vmatpush1.msra.mxu0 0.0
    %1288 = vmatprep.subr.mxu0 0.0
    %1289 = vmatpush1.msra.mxu0 0.0
    %1290 = vmatprep.subr.mxu0 0.0
    %1291 = vmatpush1.msra.mxu0 0.0
    %1292 = vmatprep.subr.mxu0 0.0
    %1293 = vmatpush1.msra.mxu0 0.0
    %1294 = vmatprep.mubr.f32.mxu0 0.0
    %v1295 = vand.u32 %v787, 4294901760
    %1296 = vmatmul.mubr.f32.gmra.mrb[0].mxu0 %v1295
    %v1297 = vpop.f32.mrb[0].mxu0
    %v1298 = vadd.f32 %v1191, %v1297
    %v1299 = vpop.f32.mrb[0].mxu0
    %1300 = vmatprep.mubr.f32.mxu0 0.0
    %v1301 = vand.u32 %v790, 4294901760
    %1302 = vmatmul.mubr.f32.gmra.mrb[0].mxu0 %v1301
    %v1303 = vpop.f32.mrb[0].mxu0
    %v1304 = vadd.f32 %v1199, %v1303
    %v1305 = vpop.f32.mrb[0].mxu0
    %1306 = vmatprep.mubr.f32.mxu0 0.0
    %v1307 = vand.u32 %v793, 4294901760
    %1308 = vmatmul.mubr.f32.gmra.mrb[0].mxu0 %v1307
    %v1309 = vpop.f32.mrb[0].mxu0
    %v1310 = vadd.f32 %v1207, %v1309
    %v1311 = vpop.f32.mrb[0].mxu0
    %1312 = vmatprep.mubr.f32.mxu0 0.0
    %v1313 = vand.u32 %v796, 4294901760
    %1314 = vmatmul.mubr.f32.gmra.mrb[0].mxu0 %v1313
    %v1315 = vpop.f32.mrb[0].mxu0
    %v1316 = vadd.f32 %v1215, %v1315
    %v1317 = vpop.f32.mrb[0].mxu0
    %1318 = vdwg.mxu0
    %1319 = vmatprep.subr.mxu0 0.0
    %v1320 = vand.u32 %v774, 4294901760
    %1321 = vmatpush1.msra.mxu0 %v1320
    %1322 = vmatprep.subr.mxu0 0.0
    %v1323 = vand.u32 %v775, 4294901760
    %1324 = vmatpush1.msra.mxu0 %v1323
    %1325 = vmatprep.subr.mxu0 0.0
    %v1326 = vand.u32 %v776, 4294901760
    %1327 = vmatpush1.msra.mxu0 %v1326
    %1328 = vmatprep.subr.mxu0 0.0
    %v1329 = vand.u32 %v777, 4294901760
    %1330 = vmatpush1.msra.mxu0 %v1329
    %1331 = vmatprep.subr.mxu0 0.0
    %1332 = vmatpush1.msra.mxu0 0.0
    %1333 = vmatprep.subr.mxu0 0.0
    %1334 = vmatpush1.msra.mxu0 0.0
    %1335 = vmatprep.subr.mxu0 0.0
    %1336 = vmatpush1.msra.mxu0 0.0
    %1337 = vmatprep.subr.mxu0 0.0
    %1338 = vmatpush1.msra.mxu0 0.0
    %1339 = vmatprep.subr.mxu0 0.0
    %1340 = vmatpush1.msra.mxu0 0.0
    %1341 = vmatprep.subr.mxu0 0.0
    %1342 = vmatpush1.msra.mxu0 0.0
    %1343 = vmatprep.subr.mxu0 0.0
    %1344 = vmatpush1.msra.mxu0 0.0
    %1345 = vmatprep.subr.mxu0 0.0
    %1346 = vmatpush1.msra.mxu0 0.0
    %1347 = vmatprep.subr.mxu0 0.0
    %1348 = vmatpush1.msra.mxu0 0.0
    %1349 = vmatprep.subr.mxu0 0.0
    %1350 = vmatpush1.msra.mxu0 0.0
    %1351 = vmatprep.subr.mxu0 0.0
    %1352 = vmatpush1.msra.mxu0 0.0
    %1353 = vmatprep.subr.mxu0 0.0
    %1354 = vmatpush1.msra.mxu0 0.0
    %1355 = vmatprep.subr.mxu0 0.0
    %1356 = vmatpush1.msra.mxu0 0.0
    %1357 = vmatprep.subr.mxu0 0.0
    %1358 = vmatpush1.msra.mxu0 0.0
    %1359 = vmatprep.subr.mxu0 0.0
    %1360 = vmatpush1.msra.mxu0 0.0
    %1361 = vmatprep.subr.mxu0 0.0
    %1362 = vmatpush1.msra.mxu0 0.0
    %1363 = vmatprep.subr.mxu0 0.0
    %1364 = vmatpush1.msra.mxu0 0.0
    %1365 = vmatprep.subr.mxu0 0.0
    %1366 = vmatpush1.msra.mxu0 0.0
    %1367 = vmatprep.subr.mxu0 0.0
    %1368 = vmatpush1.msra.mxu0 0.0
    %1369 = vmatprep.subr.mxu0 0.0
    %1370 = vmatpush1.msra.mxu0 0.0
    %1371 = vmatprep.subr.mxu0 0.0
    %1372 = vmatpush1.msra.mxu0 0.0
    %1373 = vmatprep.subr.mxu0 0.0
    %1374 = vmatpush1.msra.mxu0 0.0
    %1375 = vmatprep.subr.mxu0 0.0
    %1376 = vmatpush1.msra.mxu0 0.0
    %1377 = vmatprep.subr.mxu0 0.0
    %1378 = vmatpush1.msra.mxu0 0.0
    %1379 = vmatprep.subr.mxu0 0.0
    %1380 = vmatpush1.msra.mxu0 0.0
    %1381 = vmatprep.subr.mxu0 0.0
    %1382 = vmatpush1.msra.mxu0 0.0
    %1383 = vmatprep.subr.mxu0 0.0
    %1384 = vmatpush1.msra.mxu0 0.0
    %1385 = vmatprep.subr.mxu0 0.0
    %1386 = vmatpush1.msra.mxu0 0.0
    %1387 = vmatprep.mubr.f32.mxu0 0.0
    %v1388 = vand.u32 %v787, 4294901760
    %1389 = vmatmul.mubr.f32.gmra.mrb[0].mxu0 %v1388
    %v1390 = vpop.f32.mrb[0].mxu0
    %v1391 = vadd.f32 %v1298, %v1390
    %v1392 = vpop.f32.mrb[0].mxu0
    %1393 = vmatprep.mubr.f32.mxu0 0.0
    %v1394 = vand.u32 %v790, 4294901760
    %1395 = vmatmul.mubr.f32.gmra.mrb[0].mxu0 %v1394
    %v1396 = vpop.f32.mrb[0].mxu0
    %v1397 = vadd.f32 %v1304, %v1396
    %v1398 = vpop.f32.mrb[0].mxu0
    %1399 = vmatprep.mubr.f32.mxu0 0.0
    %v1400 = vand.u32 %v793, 4294901760
    %1401 = vmatmul.mubr.f32.gmra.mrb[0].mxu0 %v1400
    %v1402 = vpop.f32.mrb[0].mxu0
    %v1403 = vadd.f32 %v1310, %v1402
    %v1404 = vpop.f32.mrb[0].mxu0
    %1405 = vmatprep.mubr.f32.mxu0 0.0
    %v1406 = vand.u32 %v796, 4294901760
    %1407 = vmatmul.mubr.f32.gmra.mrb[0].mxu0 %v1406
    %v1408 = vpop.f32.mrb[0].mxu0
    %v1409 = vadd.f32 %v1316, %v1408
    %v1410 = vpop.f32.mrb[0].mxu0
    %1411 = vdwg.mxu0
    %v1412 = vmul.f32 %v1391, 1.442695
    %v1413 = vpow.pop %v1412
    %v1414 = vmul.f32 %v1397, 1.442695
    %v1415 = vpow.pop %v1414
    %v1416 = vmul.f32 %v1403, 1.442695
    %v1417 = vpow.pop %v1416
    %v1418 = vmul.f32 %v1409, 1.442695
    %v1419 = vpow.pop %v1418
    %v1420 = vmul.f32 %v105, %v1413
    %v1421 = vmul.f32 %v106, %v1415
    %v1422 = vmul.f32 %v107, %v1417
    %v1423 = vmul.f32 %v108, %v1419
    %1428 = vrot.lane.b32.xlu0 %v1391, 120
    %v1429 = vpop.permute.xlu0 %1428
    %1430 = vrot.lane.b32.xlu0 %v1397, 120
    %v1431 = vpop.permute.xlu0 %1430
    %1432 = vrot.lane.b32.xlu0 %v1403, 120
    %v1433 = vpop.permute.xlu0 %1432
    %1434 = vrot.lane.b32.xlu0 %v1409, 120
    %v1435 = vpop.permute.xlu0 %1434
    %v1440 = vadd.f32 %v1420, %v1429
    %v1441 = vadd.f32 %v1421, %v1431
    %v1442 = vadd.f32 %v1422, %v1433
    %v1443 = vadd.f32 %v1423, %v1435
    %v1444 = vsel %vm173, %v105, %v1440
    %v1445 = vsel %vm173, %v106, %v1441
    %v1446 = vsel %vm173, %v107, %v1442
    %v1447 = vsel %vm173, %v108, %v1443
    %v1448 = vadd.f32 %v1391, 0.0
    %v1449 = vadd.f32 %v1397, 0.0
    %v1450 = vadd.f32 %v1403, 0.0
    %v1451 = vadd.f32 %v1409, 0.0
    %s1452 = scalar_lea.vmem %s3, 8
    %v1453 = vld [vmem:[%s1452] sm:$0xff]
    %s1454 = scalar_lea.vmem %s4, 1
    %v1455 = vld [vmem:[%s1454] sm:$0x1]
    %v1457 = vlaneseq
    %v1458 = vshrl.u32 %v1457, 7
    %v1459 = vsub.s32 0, %v1458
    %v1460 = vrot.slane %v1455, %v1459
    %v1463 = vsel %vm113, %v1444, 0
    %v1466 = vsel %vm113, %v1445, 0
    %v1469 = vsel %vm113, %v1446, 0
    %v1472 = vsel %vm113, %v1447, 0
    %1474 = vmatprep.subr.mxu0 0.0
    %v1475 = vand.u32 %v1453, 4294901760
    %1476 = vmatpush1.msra.mxu0 %v1475
    %1477 = vmatprep.subr.mxu0 0.0
    %1478 = vmatpush1.msra.mxu0 0.0
    %1479 = vmatprep.subr.mxu0 0.0
    %1480 = vmatpush1.msra.mxu0 0.0
    %1481 = vmatprep.subr.mxu0 0.0
    %1482 = vmatpush1.msra.mxu0 0.0
    %1483 = vmatprep.subr.mxu0 0.0
    %1484 = vmatpush1.msra.mxu0 0.0
    %1485 = vmatprep.subr.mxu0 0.0
    %1486 = vmatpush1.msra.mxu0 0.0
    %1487 = vmatprep.subr.mxu0 0.0
    %1488 = vmatpush1.msra.mxu0 0.0
    %1489 = vmatprep.subr.mxu0 0.0
    %1490 = vmatpush1.msra.mxu0 0.0
    %1491 = vmatprep.subr.mxu0 0.0
    %1492 = vmatpush1.msra.mxu0 0.0
    %1493 = vmatprep.subr.mxu0 0.0
    %1494 = vmatpush1.msra.mxu0 0.0
    %1495 = vmatprep.subr.mxu0 0.0
    %1496 = vmatpush1.msra.mxu0 0.0
    %1497 = vmatprep.subr.mxu0 0.0
    %1498 = vmatpush1.msra.mxu0 0.0
    %1499 = vmatprep.subr.mxu0 0.0
    %1500 = vmatpush1.msra.mxu0 0.0
    %1501 = vmatprep.subr.mxu0 0.0
    %1502 = vmatpush1.msra.mxu0 0.0
    %1503 = vmatprep.subr.mxu0 0.0
    %1504 = vmatpush1.msra.mxu0 0.0
    %1505 = vmatprep.subr.mxu0 0.0
    %1506 = vmatpush1.msra.mxu0 0.0
    %1507 = vmatprep.subr.mxu0 0.0
    %1508 = vmatpush1.msra.mxu0 0.0
    %1509 = vmatprep.subr.mxu0 0.0
    %1510 = vmatpush1.msra.mxu0 0.0
    %1511 = vmatprep.subr.mxu0 0.0
    %1512 = vmatpush1.msra.mxu0 0.0
    %1513 = vmatprep.subr.mxu0 0.0
    %1514 = vmatpush1.msra.mxu0 0.0
    %1515 = vmatprep.subr.mxu0 0.0
    %1516 = vmatpush1.msra.mxu0 0.0
    %1517 = vmatprep.subr.mxu0 0.0
    %1518 = vmatpush1.msra.mxu0 0.0
    %1519 = vmatprep.subr.mxu0 0.0
    %1520 = vmatpush1.msra.mxu0 0.0
    %1521 = vmatprep.subr.mxu0 0.0
    %1522 = vmatpush1.msra.mxu0 0.0
    %1523 = vmatprep.subr.mxu0 0.0
    %1524 = vmatpush1.msra.mxu0 0.0
    %1525 = vmatprep.subr.mxu0 0.0
    %1526 = vmatpush1.msra.mxu0 0.0
    %1527 = vmatprep.subr.mxu0 0.0
    %1528 = vmatpush1.msra.mxu0 0.0
    %1529 = vmatprep.subr.mxu0 0.0
    %1530 = vmatpush1.msra.mxu0 0.0
    %1531 = vmatprep.subr.mxu0 0.0
    %1532 = vmatpush1.msra.mxu0 0.0
    %1533 = vmatprep.subr.mxu0 0.0
    %1534 = vmatpush1.msra.mxu0 0.0
    %1535 = vmatprep.subr.mxu0 0.0
    %1536 = vmatpush1.msra.mxu0 0.0
    %1537 = vmatprep.subr.mxu0 0.0
    %1538 = vmatpush1.msra.mxu0 0.0
    %1539 = vmatprep.mubr.f32.mxu0 0.0
    %v1540 = vand.u32 %v1463, 4294901760
    %v1541 = vsub.f32 %v1463, %v1540
    %v1542 = vand.u32 %v1541, 4294901760
    %v1543 = vsub.f32 %v1541, %v1542
    %v1544 = vand.u32 %v1543, 4294901760
    %1545 = vmatmul.mubr.f32.gmra.mrb[0].mxu0 %v1544
    %v1546 = vpop.f32.mrb[0].mxu0
    %v1547 = vadd.f32 %v1460, %v1546
    %v1548 = vpop.f32.mrb[0].mxu0
    %1549 = vmatprep.mubr.f32.mxu0 0.0
    %v1550 = vand.u32 %v1466, 4294901760
    %v1551 = vsub.f32 %v1466, %v1550
    %v1552 = vand.u32 %v1551, 4294901760
    %v1553 = vsub.f32 %v1551, %v1552
    %v1554 = vand.u32 %v1553, 4294901760
    %1555 = vmatmul.mubr.f32.gmra.mrb[0].mxu0 %v1554
    %v1556 = vpop.f32.mrb[0].mxu0
    %v1557 = vadd.f32 %v1460, %v1556
    %v1558 = vpop.f32.mrb[0].mxu0
    %1559 = vmatprep.mubr.f32.mxu0 0.0
    %v1560 = vand.u32 %v1469, 4294901760
    %v1561 = vsub.f32 %v1469, %v1560
    %v1562 = vand.u32 %v1561, 4294901760
    %v1563 = vsub.f32 %v1561, %v1562
    %v1564 = vand.u32 %v1563, 4294901760
    %1565 = vmatmul.mubr.f32.gmra.mrb[0].mxu0 %v1564
    %v1566 = vpop.f32.mrb[0].mxu0
    %v1567 = vadd.f32 %v1460, %v1566
    %v1568 = vpop.f32.mrb[0].mxu0
    %1569 = vmatprep.mubr.f32.mxu0 0.0
    %v1570 = vand.u32 %v1472, 4294901760
    %v1571 = vsub.f32 %v1472, %v1570
    %v1572 = vand.u32 %v1571, 4294901760
    %v1573 = vsub.f32 %v1571, %v1572
    %v1574 = vand.u32 %v1573, 4294901760
    %1575 = vmatmul.mubr.f32.gmra.mrb[0].mxu0 %v1574
    %v1576 = vpop.f32.mrb[0].mxu0
    %v1577 = vadd.f32 %v1460, %v1576
    %v1578 = vpop.f32.mrb[0].mxu0
    %1579 = vdwg.mxu0
    %1580 = vmatprep.subr.mxu0 0.0
    %v1581 = vand.u32 %v1453, 4294901760
    %v1582 = vsub.f32 %v1453, %v1581
    %v1583 = vand.u32 %v1582, 4294901760
    %v1584 = vsub.f32 %v1582, %v1583
    %v1585 = vand.u32 %v1584, 4294901760
    %1586 = vmatpush1.msra.mxu0 %v1585
    %1587 = vmatprep.subr.mxu0 0.0
    %1588 = vmatpush1.msra.mxu0 0.0
    %1589 = vmatprep.subr.mxu0 0.0
    %1590 = vmatpush1.msra.mxu0 0.0
    %1591 = vmatprep.subr.mxu0 0.0
    %1592 = vmatpush1.msra.mxu0 0.0
    %1593 = vmatprep.subr.mxu0 0.0
    %1594 = vmatpush1.msra.mxu0 0.0
    %1595 = vmatprep.subr.mxu0 0.0
    %1596 = vmatpush1.msra.mxu0 0.0
    %1597 = vmatprep.subr.mxu0 0.0
    %1598 = vmatpush1.msra.mxu0 0.0
    %1599 = vmatprep.subr.mxu0 0.0
    %1600 = vmatpush1.msra.mxu0 0.0
    %1601 = vmatprep.subr.mxu0 0.0
    %1602 = vmatpush1.msra.mxu0 0.0
    %1603 = vmatprep.subr.mxu0 0.0
    %1604 = vmatpush1.msra.mxu0 0.0
    %1605 = vmatprep.subr.mxu0 0.0
    %1606 = vmatpush1.msra.mxu0 0.0
    %1607 = vmatprep.subr.mxu0 0.0
    %1608 = vmatpush1.msra.mxu0 0.0
    %1609 = vmatprep.subr.mxu0 0.0
    %1610 = vmatpush1.msra.mxu0 0.0
    %1611 = vmatprep.subr.mxu0 0.0
    %1612 = vmatpush1.msra.mxu0 0.0
    %1613 = vmatprep.subr.mxu0 0.0
    %1614 = vmatpush1.msra.mxu0 0.0
    %1615 = vmatprep.subr.mxu0 0.0
    %1616 = vmatpush1.msra.mxu0 0.0
    %1617 = vmatprep.subr.mxu0 0.0
    %1618 = vmatpush1.msra.mxu0 0.0
    %1619 = vmatprep.subr.mxu0 0.0
    %1620 = vmatpush1.msra.mxu0 0.0
    %1621 = vmatprep.subr.mxu0 0.0
    %1622 = vmatpush1.msra.mxu0 0.0
    %1623 = vmatprep.subr.mxu0 0.0
    %1624 = vmatpush1.msra.mxu0 0.0
    %1625 = vmatprep.subr.mxu0 0.0
    %1626 = vmatpush1.msra.mxu0 0.0
    %1627 = vmatprep.subr.mxu0 0.0
    %1628 = vmatpush1.msra.mxu0 0.0
    %1629 = vmatprep.subr.mxu0 0.0
    %1630 = vmatpush1.msra.mxu0 0.0
    %1631 = vmatprep.subr.mxu0 0.0
    %1632 = vmatpush1.msra.mxu0 0.0
    %1633 = vmatprep.subr.mxu0 0.0
    %1634 = vmatpush1.msra.mxu0 0.0
    %1635 = vmatprep.subr.mxu0 0.0
    %1636 = vmatpush1.msra.mxu0 0.0
    %1637 = vmatprep.subr.mxu0 0.0
    %1638 = vmatpush1.msra.mxu0 0.0
    %1639 = vmatprep.subr.mxu0 0.0
    %1640 = vmatpush1.msra.mxu0 0.0
    %1641 = vmatprep.subr.mxu0 0.0
    %1642 = vmatpush1.msra.mxu0 0.0
    %1643 = vmatprep.subr.mxu0 0.0
    %1644 = vmatpush1.msra.mxu0 0.0
    %1645 = vmatprep.subr.mxu0 0.0
    %1646 = vmatpush1.msra.mxu0 0.0
    %1647 = vmatprep.subr.mxu0 0.0
    %1648 = vmatpush1.msra.mxu0 0.0
    %1649 = vmatprep.mubr.f32.mxu0 0.0
    %v1650 = vand.u32 %v1463, 4294901760
    %1651 = vmatmul.mubr.f32.gmra.mrb[0].mxu0 %v1650
    %v1652 = vpop.f32.mrb[0].mxu0
    %v1653 = vadd.f32 %v1547, %v1652
    %v1654 = vpop.f32.mrb[0].mxu0
    %1655 = vmatprep.mubr.f32.mxu0 0.0
    %v1656 = vand.u32 %v1466, 4294901760
    %1657 = vmatmul.mubr.f32.gmra.mrb[0].mxu0 %v1656
    %v1658 = vpop.f32.mrb[0].mxu0
    %v1659 = vadd.f32 %v1557, %v1658
    %v1660 = vpop.f32.mrb[0].mxu0
    %1661 = vmatprep.mubr.f32.mxu0 0.0
    %v1662 = vand.u32 %v1469, 4294901760
    %1663 = vmatmul.mubr.f32.gmra.mrb[0].mxu0 %v1662
    %v1664 = vpop.f32.mrb[0].mxu0
    %v1665 = vadd.f32 %v1567, %v1664
    %v1666 = vpop.f32.mrb[0].mxu0
    %1667 = vmatprep.mubr.f32.mxu0 0.0
    %v1668 = vand.u32 %v1472, 4294901760
    %1669 = vmatmul.mubr.f32.gmra.mrb[0].mxu0 %v1668
    %v1670 = vpop.f32.mrb[0].mxu0
    %v1671 = vadd.f32 %v1577, %v1670
    %v1672 = vpop.f32.mrb[0].mxu0
    %1673 = vdwg.mxu0
    %1674 = vmatprep.subr.mxu0 0.0
    %v1675 = vand.u32 %v1453, 4294901760
    %v1676 = vsub.f32 %v1453, %v1675
    %1677 = vmatpush1.msra.mxu0 %v1676
    %1678 = vmatprep.subr.mxu0 0.0
    %1679 = vmatpush1.msra.mxu0 0.0
    %1680 = vmatprep.subr.mxu0 0.0
    %1681 = vmatpush1.msra.mxu0 0.0
    %1682 = vmatprep.subr.mxu0 0.0
    %1683 = vmatpush1.msra.mxu0 0.0
    %1684 = vmatprep.subr.mxu0 0.0
    %1685 = vmatpush1.msra.mxu0 0.0
    %1686 = vmatprep.subr.mxu0 0.0
    %1687 = vmatpush1.msra.mxu0 0.0
    %1688 = vmatprep.subr.mxu0 0.0
    %1689 = vmatpush1.msra.mxu0 0.0
    %1690 = vmatprep.subr.mxu0 0.0
    %1691 = vmatpush1.msra.mxu0 0.0
    %1692 = vmatprep.subr.mxu0 0.0
    %1693 = vmatpush1.msra.mxu0 0.0
    %1694 = vmatprep.subr.mxu0 0.0
    %1695 = vmatpush1.msra.mxu0 0.0
    %1696 = vmatprep.subr.mxu0 0.0
    %1697 = vmatpush1.msra.mxu0 0.0
    %1698 = vmatprep.subr.mxu0 0.0
    %1699 = vmatpush1.msra.mxu0 0.0
    %1700 = vmatprep.subr.mxu0 0.0
    %1701 = vmatpush1.msra.mxu0 0.0
    %1702 = vmatprep.subr.mxu0 0.0
    %1703 = vmatpush1.msra.mxu0 0.0
    %1704 = vmatprep.subr.mxu0 0.0
    %1705 = vmatpush1.msra.mxu0 0.0
    %1706 = vmatprep.subr.mxu0 0.0
    %1707 = vmatpush1.msra.mxu0 0.0
    %1708 = vmatprep.subr.mxu0 0.0
    %1709 = vmatpush1.msra.mxu0 0.0
    %1710 = vmatprep.subr.mxu0 0.0
    %1711 = vmatpush1.msra.mxu0 0.0
    %1712 = vmatprep.subr.mxu0 0.0
    %1713 = vmatpush1.msra.mxu0 0.0
    %1714 = vmatprep.subr.mxu0 0.0
    %1715 = vmatpush1.msra.mxu0 0.0
    %1716 = vmatprep.subr.mxu0 0.0
    %1717 = vmatpush1.msra.mxu0 0.0
    %1718 = vmatprep.subr.mxu0 0.0
    %1719 = vmatpush1.msra.mxu0 0.0
    %1720 = vmatprep.subr.mxu0 0.0
    %1721 = vmatpush1.msra.mxu0 0.0
    %1722 = vmatprep.subr.mxu0 0.0
    %1723 = vmatpush1.msra.mxu0 0.0
    %1724 = vmatprep.subr.mxu0 0.0
    %1725 = vmatpush1.msra.mxu0 0.0
    %1726 = vmatprep.subr.mxu0 0.0
    %1727 = vmatpush1.msra.mxu0 0.0
    %1728 = vmatprep.subr.mxu0 0.0
    %1729 = vmatpush1.msra.mxu0 0.0
    %1730 = vmatprep.subr.mxu0 0.0
    %1731 = vmatpush1.msra.mxu0 0.0
    %1732 = vmatprep.subr.mxu0 0.0
    %1733 = vmatpush1.msra.mxu0 0.0
    %1734 = vmatprep.subr.mxu0 0.0
    %1735 = vmatpush1.msra.mxu0 0.0
    %1736 = vmatprep.subr.mxu0 0.0
    %1737 = vmatpush1.msra.mxu0 0.0
    %1738 = vmatprep.subr.mxu0 0.0
    %1739 = vmatpush1.msra.mxu0 0.0
    %1740 = vmatprep.mubr.f32.mxu0 0.0
    %v1741 = vand.u32 %v1463, 4294901760
    %v1742 = vsub.f32 %v1463, %v1741
    %1743 = vmatmul.mubr.f32.gmra.mrb[0].mxu0 %v1742
    %v1744 = vpop.f32.mrb[0].mxu0
    %v1745 = vadd.f32 %v1653, %v1744
    %v1746 = vpop.f32.mrb[0].mxu0
    %1747 = vmatprep.mubr.f32.mxu0 0.0
    %v1748 = vand.u32 %v1466, 4294901760
    %v1749 = vsub.f32 %v1466, %v1748
    %1750 = vmatmul.mubr.f32.gmra.mrb[0].mxu0 %v1749
    %v1751 = vpop.f32.mrb[0].mxu0
    %v1752 = vadd.f32 %v1659, %v1751
    %v1753 = vpop.f32.mrb[0].mxu0
    %1754 = vmatprep.mubr.f32.mxu0 0.0
    %v1755 = vand.u32 %v1469, 4294901760
    %v1756 = vsub.f32 %v1469, %v1755
    %1757 = vmatmul.mubr.f32.gmra.mrb[0].mxu0 %v1756
    %v1758 = vpop.f32.mrb[0].mxu0
    %v1759 = vadd.f32 %v1665, %v1758
    %v1760 = vpop.f32.mrb[0].mxu0
    %1761 = vmatprep.mubr.f32.mxu0 0.0
    %v1762 = vand.u32 %v1472, 4294901760
    %v1763 = vsub.f32 %v1472, %v1762
    %1764 = vmatmul.mubr.f32.gmra.mrb[0].mxu0 %v1763
    %v1765 = vpop.f32.mrb[0].mxu0
    %v1766 = vadd.f32 %v1671, %v1765
    %v1767 = vpop.f32.mrb[0].mxu0
    %1768 = vdwg.mxu0
    %1769 = vmatprep.subr.mxu0 0.0
    %v1770 = vand.u32 %v1453, 4294901760
    %1771 = vmatpush1.msra.mxu0 %v1770
    %1772 = vmatprep.subr.mxu0 0.0
    %1773 = vmatpush1.msra.mxu0 0.0
    %1774 = vmatprep.subr.mxu0 0.0
    %1775 = vmatpush1.msra.mxu0 0.0
    %1776 = vmatprep.subr.mxu0 0.0
    %1777 = vmatpush1.msra.mxu0 0.0
    %1778 = vmatprep.subr.mxu0 0.0
    %1779 = vmatpush1.msra.mxu0 0.0
    %1780 = vmatprep.subr.mxu0 0.0
    %1781 = vmatpush1.msra.mxu0 0.0
    %1782 = vmatprep.subr.mxu0 0.0
    %1783 = vmatpush1.msra.mxu0 0.0
    %1784 = vmatprep.subr.mxu0 0.0
    %1785 = vmatpush1.msra.mxu0 0.0
    %1786 = vmatprep.subr.mxu0 0.0
    %1787 = vmatpush1.msra.mxu0 0.0
    %1788 = vmatprep.subr.mxu0 0.0
    %1789 = vmatpush1.msra.mxu0 0.0
    %1790 = vmatprep.subr.mxu0 0.0
    %1791 = vmatpush1.msra.mxu0 0.0
    %1792 = vmatprep.subr.mxu0 0.0
    %1793 = vmatpush1.msra.mxu0 0.0
    %1794 = vmatprep.subr.mxu0 0.0
    %1795 = vmatpush1.msra.mxu0 0.0
    %1796 = vmatprep.subr.mxu0 0.0
    %1797 = vmatpush1.msra.mxu0 0.0
    %1798 = vmatprep.subr.mxu0 0.0
    %1799 = vmatpush1.msra.mxu0 0.0
    %1800 = vmatprep.subr.mxu0 0.0
    %1801 = vmatpush1.msra.mxu0 0.0
    %1802 = vmatprep.subr.mxu0 0.0
    %1803 = vmatpush1.msra.mxu0 0.0
    %1804 = vmatprep.subr.mxu0 0.0
    %1805 = vmatpush1.msra.mxu0 0.0
    %1806 = vmatprep.subr.mxu0 0.0
    %1807 = vmatpush1.msra.mxu0 0.0
    %1808 = vmatprep.subr.mxu0 0.0
    %1809 = vmatpush1.msra.mxu0 0.0
    %1810 = vmatprep.subr.mxu0 0.0
    %1811 = vmatpush1.msra.mxu0 0.0
    %1812 = vmatprep.subr.mxu0 0.0
    %1813 = vmatpush1.msra.mxu0 0.0
    %1814 = vmatprep.subr.mxu0 0.0
    %1815 = vmatpush1.msra.mxu0 0.0
    %1816 = vmatprep.subr.mxu0 0.0
    %1817 = vmatpush1.msra.mxu0 0.0
    %1818 = vmatprep.subr.mxu0 0.0
    %1819 = vmatpush1.msra.mxu0 0.0
    %1820 = vmatprep.subr.mxu0 0.0
    %1821 = vmatpush1.msra.mxu0 0.0
    %1822 = vmatprep.subr.mxu0 0.0
    %1823 = vmatpush1.msra.mxu0 0.0
    %1824 = vmatprep.subr.mxu0 0.0
    %1825 = vmatpush1.msra.mxu0 0.0
    %1826 = vmatprep.subr.mxu0 0.0
    %1827 = vmatpush1.msra.mxu0 0.0
    %1828 = vmatprep.subr.mxu0 0.0
    %1829 = vmatpush1.msra.mxu0 0.0
    %1830 = vmatprep.subr.mxu0 0.0
    %1831 = vmatpush1.msra.mxu0 0.0
    %1832 = vmatprep.subr.mxu0 0.0
    %1833 = vmatpush1.msra.mxu0 0.0
    %1834 = vmatprep.mubr.f32.mxu0 0.0
    %v1835 = vand.u32 %v1463, 4294901760
    %v1836 = vsub.f32 %v1463, %v1835
    %v1837 = vand.u32 %v1836, 4294901760
    %1838 = vmatmul.mubr.f32.gmra.mrb[0].mxu0 %v1837
    %v1839 = vpop.f32.mrb[0].mxu0
    %v1840 = vadd.f32 %v1745, %v1839
    %v1841 = vpop.f32.mrb[0].mxu0
    %1842 = vmatprep.mubr.f32.mxu0 0.0
    %v1843 = vand.u32 %v1466, 4294901760
    %v1844 = vsub.f32 %v1466, %v1843
    %v1845 = vand.u32 %v1844, 4294901760
    %1846 = vmatmul.mubr.f32.gmra.mrb[0].mxu0 %v1845
    %v1847 = vpop.f32.mrb[0].mxu0
    %v1848 = vadd.f32 %v1752, %v1847
    %v1849 = vpop.f32.mrb[0].mxu0
    %1850 = vmatprep.mubr.f32.mxu0 0.0
    %v1851 = vand.u32 %v1469, 4294901760
    %v1852 = vsub.f32 %v1469, %v1851
    %v1853 = vand.u32 %v1852, 4294901760
    %1854 = vmatmul.mubr.f32.gmra.mrb[0].mxu0 %v1853
    %v1855 = vpop.f32.mrb[0].mxu0
    %v1856 = vadd.f32 %v1759, %v1855
    %v1857 = vpop.f32.mrb[0].mxu0
    %1858 = vmatprep.mubr.f32.mxu0 0.0
    %v1859 = vand.u32 %v1472, 4294901760
    %v1860 = vsub.f32 %v1472, %v1859
    %v1861 = vand.u32 %v1860, 4294901760
    %1862 = vmatmul.mubr.f32.gmra.mrb[0].mxu0 %v1861
    %v1863 = vpop.f32.mrb[0].mxu0
    %v1864 = vadd.f32 %v1766, %v1863
    %v1865 = vpop.f32.mrb[0].mxu0
    %1866 = vdwg.mxu0
    %1867 = vmatprep.subr.mxu0 0.0
    %v1868 = vand.u32 %v1453, 4294901760
    %v1869 = vsub.f32 %v1453, %v1868
    %v1870 = vand.u32 %v1869, 4294901760
    %1871 = vmatpush1.msra.mxu0 %v1870
    %1872 = vmatprep.subr.mxu0 0.0
    %1873 = vmatpush1.msra.mxu0 0.0
    %1874 = vmatprep.subr.mxu0 0.0
    %1875 = vmatpush1.msra.mxu0 0.0
    %1876 = vmatprep.subr.mxu0 0.0
    %1877 = vmatpush1.msra.mxu0 0.0
    %1878 = vmatprep.subr.mxu0 0.0
    %1879 = vmatpush1.msra.mxu0 0.0
    %1880 = vmatprep.subr.mxu0 0.0
    %1881 = vmatpush1.msra.mxu0 0.0
    %1882 = vmatprep.subr.mxu0 0.0
    %1883 = vmatpush1.msra.mxu0 0.0
    %1884 = vmatprep.subr.mxu0 0.0
    %1885 = vmatpush1.msra.mxu0 0.0
    %1886 = vmatprep.subr.mxu0 0.0
    %1887 = vmatpush1.msra.mxu0 0.0
    %1888 = vmatprep.subr.mxu0 0.0
    %1889 = vmatpush1.msra.mxu0 0.0
    %1890 = vmatprep.subr.mxu0 0.0
    %1891 = vmatpush1.msra.mxu0 0.0
    %1892 = vmatprep.subr.mxu0 0.0
    %1893 = vmatpush1.msra.mxu0 0.0
    %1894 = vmatprep.subr.mxu0 0.0
    %1895 = vmatpush1.msra.mxu0 0.0
    %1896 = vmatprep.subr.mxu0 0.0
    %1897 = vmatpush1.msra.mxu0 0.0
    %1898 = vmatprep.subr.mxu0 0.0
    %1899 = vmatpush1.msra.mxu0 0.0
    %1900 = vmatprep.subr.mxu0 0.0
    %1901 = vmatpush1.msra.mxu0 0.0
    %1902 = vmatprep.subr.mxu0 0.0
    %1903 = vmatpush1.msra.mxu0 0.0
    %1904 = vmatprep.subr.mxu0 0.0
    %1905 = vmatpush1.msra.mxu0 0.0
    %1906 = vmatprep.subr.mxu0 0.0
    %1907 = vmatpush1.msra.mxu0 0.0
    %1908 = vmatprep.subr.mxu0 0.0
    %1909 = vmatpush1.msra.mxu0 0.0
    %1910 = vmatprep.subr.mxu0 0.0
    %1911 = vmatpush1.msra.mxu0 0.0
    %1912 = vmatprep.subr.mxu0 0.0
    %1913 = vmatpush1.msra.mxu0 0.0
    %1914 = vmatprep.subr.mxu0 0.0
    %1915 = vmatpush1.msra.mxu0 0.0
    %1916 = vmatprep.subr.mxu0 0.0
    %1917 = vmatpush1.msra.mxu0 0.0
    %1918 = vmatprep.subr.mxu0 0.0
    %1919 = vmatpush1.msra.mxu0 0.0
    %1920 = vmatprep.subr.mxu0 0.0
    %1921 = vmatpush1.msra.mxu0 0.0
    %1922 = vmatprep.subr.mxu0 0.0
    %1923 = vmatpush1.msra.mxu0 0.0
    %1924 = vmatprep.subr.mxu0 0.0
    %1925 = vmatpush1.msra.mxu0 0.0
    %1926 = vmatprep.subr.mxu0 0.0
    %1927 = vmatpush1.msra.mxu0 0.0
    %1928 = vmatprep.subr.mxu0 0.0
    %1929 = vmatpush1.msra.mxu0 0.0
    %1930 = vmatprep.subr.mxu0 0.0
    %1931 = vmatpush1.msra.mxu0 0.0
    %1932 = vmatprep.subr.mxu0 0.0
    %1933 = vmatpush1.msra.mxu0 0.0
    %1934 = vmatprep.mubr.f32.mxu0 0.0
    %v1935 = vand.u32 %v1463, 4294901760
    %1936 = vmatmul.mubr.f32.gmra.mrb[0].mxu0 %v1935
    %v1937 = vpop.f32.mrb[0].mxu0
    %v1938 = vadd.f32 %v1840, %v1937
    %v1939 = vpop.f32.mrb[0].mxu0
    %1940 = vmatprep.mubr.f32.mxu0 0.0
    %v1941 = vand.u32 %v1466, 4294901760
    %1942 = vmatmul.mubr.f32.gmra.mrb[0].mxu0 %v1941
    %v1943 = vpop.f32.mrb[0].mxu0
    %v1944 = vadd.f32 %v1848, %v1943
    %v1945 = vpop.f32.mrb[0].mxu0
    %1946 = vmatprep.mubr.f32.mxu0 0.0
    %v1947 = vand.u32 %v1469, 4294901760
    %1948 = vmatmul.mubr.f32.gmra.mrb[0].mxu0 %v1947
    %v1949 = vpop.f32.mrb[0].mxu0
    %v1950 = vadd.f32 %v1856, %v1949
    %v1951 = vpop.f32.mrb[0].mxu0
    %1952 = vmatprep.mubr.f32.mxu0 0.0
    %v1953 = vand.u32 %v1472, 4294901760
    %1954 = vmatmul.mubr.f32.gmra.mrb[0].mxu0 %v1953
    %v1955 = vpop.f32.mrb[0].mxu0
    %v1956 = vadd.f32 %v1864, %v1955
    %v1957 = vpop.f32.mrb[0].mxu0
    %1958 = vdwg.mxu0
    %1959 = vmatprep.subr.mxu0 0.0
    %v1960 = vand.u32 %v1453, 4294901760
    %1961 = vmatpush1.msra.mxu0 %v1960
    %1962 = vmatprep.subr.mxu0 0.0
    %1963 = vmatpush1.msra.mxu0 0.0
    %1964 = vmatprep.subr.mxu0 0.0
    %1965 = vmatpush1.msra.mxu0 0.0
    %1966 = vmatprep.subr.mxu0 0.0
    %1967 = vmatpush1.msra.mxu0 0.0
    %1968 = vmatprep.subr.mxu0 0.0
    %1969 = vmatpush1.msra.mxu0 0.0
    %1970 = vmatprep.subr.mxu0 0.0
    %1971 = vmatpush1.msra.mxu0 0.0
    %1972 = vmatprep.subr.mxu0 0.0
    %1973 = vmatpush1.msra.mxu0 0.0
    %1974 = vmatprep.subr.mxu0 0.0
    %1975 = vmatpush1.msra.mxu0 0.0
    %1976 = vmatprep.subr.mxu0 0.0
    %1977 = vmatpush1.msra.mxu0 0.0
    %1978 = vmatprep.subr.mxu0 0.0
    %1979 = vmatpush1.msra.mxu0 0.0
    %1980 = vmatprep.subr.mxu0 0.0
    %1981 = vmatpush1.msra.mxu0 0.0
    %1982 = vmatprep.subr.mxu0 0.0
    %1983 = vmatpush1.msra.mxu0 0.0
    %1984 = vmatprep.subr.mxu0 0.0
    %1985 = vmatpush1.msra.mxu0 0.0
    %1986 = vmatprep.subr.mxu0 0.0
    %1987 = vmatpush1.msra.mxu0 0.0
    %1988 = vmatprep.subr.mxu0 0.0
    %1989 = vmatpush1.msra.mxu0 0.0
    %1990 = vmatprep.subr.mxu0 0.0
    %1991 = vmatpush1.msra.mxu0 0.0
    %1992 = vmatprep.subr.mxu0 0.0
    %1993 = vmatpush1.msra.mxu0 0.0
    %1994 = vmatprep.subr.mxu0 0.0
    %1995 = vmatpush1.msra.mxu0 0.0
    %1996 = vmatprep.subr.mxu0 0.0
    %1997 = vmatpush1.msra.mxu0 0.0
    %1998 = vmatprep.subr.mxu0 0.0
    %1999 = vmatpush1.msra.mxu0 0.0
    %2000 = vmatprep.subr.mxu0 0.0
    %2001 = vmatpush1.msra.mxu0 0.0
    %2002 = vmatprep.subr.mxu0 0.0
    %2003 = vmatpush1.msra.mxu0 0.0
    %2004 = vmatprep.subr.mxu0 0.0
    %2005 = vmatpush1.msra.mxu0 0.0
    %2006 = vmatprep.subr.mxu0 0.0
    %2007 = vmatpush1.msra.mxu0 0.0
    %2008 = vmatprep.subr.mxu0 0.0
    %2009 = vmatpush1.msra.mxu0 0.0
    %2010 = vmatprep.subr.mxu0 0.0
    %2011 = vmatpush1.msra.mxu0 0.0
    %2012 = vmatprep.subr.mxu0 0.0
    %2013 = vmatpush1.msra.mxu0 0.0
    %2014 = vmatprep.subr.mxu0 0.0
    %2015 = vmatpush1.msra.mxu0 0.0
    %2016 = vmatprep.subr.mxu0 0.0
    %2017 = vmatpush1.msra.mxu0 0.0
    %2018 = vmatprep.subr.mxu0 0.0
    %2019 = vmatpush1.msra.mxu0 0.0
    %2020 = vmatprep.subr.mxu0 0.0
    %2021 = vmatpush1.msra.mxu0 0.0
    %2022 = vmatprep.subr.mxu0 0.0
    %2023 = vmatpush1.msra.mxu0 0.0
    %2024 = vmatprep.mubr.f32.mxu0 0.0
    %v2025 = vand.u32 %v1463, 4294901760
    %2026 = vmatmul.mubr.f32.gmra.mrb[0].mxu0 %v2025
    %v2027 = vpop.f32.mrb[0].mxu0
    %v2028 = vadd.f32 %v1938, %v2027
    %v2029 = vpop.f32.mrb[0].mxu0
    %2030 = vmatprep.mubr.f32.mxu0 0.0
    %v2031 = vand.u32 %v1466, 4294901760
    %2032 = vmatmul.mubr.f32.gmra.mrb[0].mxu0 %v2031
    %v2033 = vpop.f32.mrb[0].mxu0
    %v2034 = vadd.f32 %v1944, %v2033
    %v2035 = vpop.f32.mrb[0].mxu0
    %2036 = vmatprep.mubr.f32.mxu0 0.0
    %v2037 = vand.u32 %v1469, 4294901760
    %2038 = vmatmul.mubr.f32.gmra.mrb[0].mxu0 %v2037
    %v2039 = vpop.f32.mrb[0].mxu0
    %v2040 = vadd.f32 %v1950, %v2039
    %v2041 = vpop.f32.mrb[0].mxu0
    %2042 = vmatprep.mubr.f32.mxu0 0.0
    %v2043 = vand.u32 %v1472, 4294901760
    %2044 = vmatmul.mubr.f32.gmra.mrb[0].mxu0 %v2043
    %v2045 = vpop.f32.mrb[0].mxu0
    %v2046 = vadd.f32 %v1956, %v2045
    %v2047 = vpop.f32.mrb[0].mxu0
    %2048 = vdwg.mxu0
    %v2049 = vtanh.pop %v2028
    %v2050 = vtanh.pop %v2034
    %v2051 = vtanh.pop %v2040
    %v2052 = vtanh.pop %v2046
    %s2053 = scalar_lea.vmem %s5, 32
    %v2054 = vld [vmem:[%s2053] sm:$0xff]
    %v2055 = vld [vmem:[%s2053 + $0x8] sm:$0xff]
    %v2056 = vld [vmem:[%s2053 + $0x10] sm:$0xff]
    %v2057 = vld [vmem:[%s2053 + $0x18] sm:$0xff]
    %s2058 = scalar_lea.vmem %s6, 1
    %v2059 = vld [vmem:[%s2058] sm:$0x1]
    %v2061 = vlaneseq
    %v2062 = vshrl.u32 %v2061, 7
    %v2063 = vsub.s32 0, %v2062
    %v2064 = vrot.slane %v2059, %v2063
    %v2067 = vsel %vm785, %v2049, 0
    %v2070 = vsel %vm785, %v2050, 0
    %v2073 = vsel %vm785, %v2051, 0
    %v2076 = vsel %vm785, %v2052, 0
    %2078 = vmatprep.subr.mxu0 0.0
    %v2079 = vand.u32 %v2054, 4294901760
    %2080 = vmatpush1.msra.mxu0 %v2079
    %2081 = vmatprep.subr.mxu0 0.0
    %v2082 = vand.u32 %v2055, 4294901760
    %2083 = vmatpush1.msra.mxu0 %v2082
    %2084 = vmatprep.subr.mxu0 0.0
    %v2085 = vand.u32 %v2056, 4294901760
    %2086 = vmatpush1.msra.mxu0 %v2085
    %2087 = vmatprep.subr.mxu0 0.0
    %v2088 = vand.u32 %v2057, 4294901760
    %2089 = vmatpush1.msra.mxu0 %v2088
    %2090 = vmatprep.subr.mxu0 0.0
    %2091 = vmatpush1.msra.mxu0 0.0
    %2092 = vmatprep.subr.mxu0 0.0
    %2093 = vmatpush1.msra.mxu0 0.0
    %2094 = vmatprep.subr.mxu0 0.0
    %2095 = vmatpush1.msra.mxu0 0.0
    %2096 = vmatprep.subr.mxu0 0.0
    %2097 = vmatpush1.msra.mxu0 0.0
    %2098 = vmatprep.subr.mxu0 0.0
    %2099 = vmatpush1.msra.mxu0 0.0
    %2100 = vmatprep.subr.mxu0 0.0
    %2101 = vmatpush1.msra.mxu0 0.0
    %2102 = vmatprep.subr.mxu0 0.0
    %2103 = vmatpush1.msra.mxu0 0.0
    %2104 = vmatprep.subr.mxu0 0.0
    %2105 = vmatpush1.msra.mxu0 0.0
    %2106 = vmatprep.subr.mxu0 0.0
    %2107 = vmatpush1.msra.mxu0 0.0
    %2108 = vmatprep.subr.mxu0 0.0
    %2109 = vmatpush1.msra.mxu0 0.0
    %2110 = vmatprep.subr.mxu0 0.0
    %2111 = vmatpush1.msra.mxu0 0.0
    %2112 = vmatprep.subr.mxu0 0.0
    %2113 = vmatpush1.msra.mxu0 0.0
    %2114 = vmatprep.subr.mxu0 0.0
    %2115 = vmatpush1.msra.mxu0 0.0
    %2116 = vmatprep.subr.mxu0 0.0
    %2117 = vmatpush1.msra.mxu0 0.0
    %2118 = vmatprep.subr.mxu0 0.0
    %2119 = vmatpush1.msra.mxu0 0.0
    %2120 = vmatprep.subr.mxu0 0.0
    %2121 = vmatpush1.msra.mxu0 0.0
    %2122 = vmatprep.subr.mxu0 0.0
    %2123 = vmatpush1.msra.mxu0 0.0
    %2124 = vmatprep.subr.mxu0 0.0
    %2125 = vmatpush1.msra.mxu0 0.0
    %2126 = vmatprep.subr.mxu0 0.0
    %2127 = vmatpush1.msra.mxu0 0.0
    %2128 = vmatprep.subr.mxu0 0.0
    %2129 = vmatpush1.msra.mxu0 0.0
    %2130 = vmatprep.subr.mxu0 0.0
    %2131 = vmatpush1.msra.mxu0 0.0
    %2132 = vmatprep.subr.mxu0 0.0
    %2133 = vmatpush1.msra.mxu0 0.0
    %2134 = vmatprep.subr.mxu0 0.0
    %2135 = vmatpush1.msra.mxu0 0.0
    %2136 = vmatprep.subr.mxu0 0.0
    %2137 = vmatpush1.msra.mxu0 0.0
    %2138 = vmatprep.subr.mxu0 0.0
    %2139 = vmatpush1.msra.mxu0 0.0
    %2140 = vmatprep.subr.mxu0 0.0
    %2141 = vmatpush1.msra.mxu0 0.0
    %2142 = vmatprep.subr.mxu0 0.0
    %2143 = vmatpush1.msra.mxu0 0.0
    %2144 = vmatprep.subr.mxu0 0.0
    %2145 = vmatpush1.msra.mxu0 0.0
    %2146 = vmatprep.mubr.f32.mxu0 0.0
    %v2147 = vand.u32 %v2067, 4294901760
    %v2148 = vsub.f32 %v2067, %v2147
    %v2149 = vand.u32 %v2148, 4294901760
    %v2150 = vsub.f32 %v2148, %v2149
    %v2151 = vand.u32 %v2150, 4294901760
    %2152 = vmatmul.mubr.f32.gmra.mrb[0].mxu0 %v2151
    %v2153 = vpop.f32.mrb[0].mxu0
    %v2154 = vadd.f32 %v2064, %v2153
    %v2155 = vpop.f32.mrb[0].mxu0
    %2156 = vmatprep.mubr.f32.mxu0 0.0
    %v2157 = vand.u32 %v2070, 4294901760
    %v2158 = vsub.f32 %v2070, %v2157
    %v2159 = vand.u32 %v2158, 4294901760
    %v2160 = vsub.f32 %v2158, %v2159
    %v2161 = vand.u32 %v2160, 4294901760
    %2162 = vmatmul.mubr.f32.gmra.mrb[0].mxu0 %v2161
    %v2163 = vpop.f32.mrb[0].mxu0
    %v2164 = vadd.f32 %v2064, %v2163
    %v2165 = vpop.f32.mrb[0].mxu0
    %2166 = vmatprep.mubr.f32.mxu0 0.0
    %v2167 = vand.u32 %v2073, 4294901760
    %v2168 = vsub.f32 %v2073, %v2167
    %v2169 = vand.u32 %v2168, 4294901760
    %v2170 = vsub.f32 %v2168, %v2169
    %v2171 = vand.u32 %v2170, 4294901760
    %2172 = vmatmul.mubr.f32.gmra.mrb[0].mxu0 %v2171
    %v2173 = vpop.f32.mrb[0].mxu0
    %v2174 = vadd.f32 %v2064, %v2173
    %v2175 = vpop.f32.mrb[0].mxu0
    %2176 = vmatprep.mubr.f32.mxu0 0.0
    %v2177 = vand.u32 %v2076, 4294901760
    %v2178 = vsub.f32 %v2076, %v2177
    %v2179 = vand.u32 %v2178, 4294901760
    %v2180 = vsub.f32 %v2178, %v2179
    %v2181 = vand.u32 %v2180, 4294901760
    %2182 = vmatmul.mubr.f32.gmra.mrb[0].mxu0 %v2181
    %v2183 = vpop.f32.mrb[0].mxu0
    %v2184 = vadd.f32 %v2064, %v2183
    %v2185 = vpop.f32.mrb[0].mxu0
    %2186 = vdwg.mxu0
    %2187 = vmatprep.subr.mxu0 0.0
    %v2188 = vand.u32 %v2054, 4294901760
    %v2189 = vsub.f32 %v2054, %v2188
    %v2190 = vand.u32 %v2189, 4294901760
    %v2191 = vsub.f32 %v2189, %v2190
    %v2192 = vand.u32 %v2191, 4294901760
    %2193 = vmatpush1.msra.mxu0 %v2192
    %2194 = vmatprep.subr.mxu0 0.0
    %v2195 = vand.u32 %v2055, 4294901760
    %v2196 = vsub.f32 %v2055, %v2195
    %v2197 = vand.u32 %v2196, 4294901760
    %v2198 = vsub.f32 %v2196, %v2197
    %v2199 = vand.u32 %v2198, 4294901760
    %2200 = vmatpush1.msra.mxu0 %v2199
    %2201 = vmatprep.subr.mxu0 0.0
    %v2202 = vand.u32 %v2056, 4294901760
    %v2203 = vsub.f32 %v2056, %v2202
    %v2204 = vand.u32 %v2203, 4294901760
    %v2205 = vsub.f32 %v2203, %v2204
    %v2206 = vand.u32 %v2205, 4294901760
    %2207 = vmatpush1.msra.mxu0 %v2206
    %2208 = vmatprep.subr.mxu0 0.0
    %v2209 = vand.u32 %v2057, 4294901760
    %v2210 = vsub.f32 %v2057, %v2209
    %v2211 = vand.u32 %v2210, 4294901760
    %v2212 = vsub.f32 %v2210, %v2211
    %v2213 = vand.u32 %v2212, 4294901760
    %2214 = vmatpush1.msra.mxu0 %v2213
    %2215 = vmatprep.subr.mxu0 0.0
    %2216 = vmatpush1.msra.mxu0 0.0
    %2217 = vmatprep.subr.mxu0 0.0
    %2218 = vmatpush1.msra.mxu0 0.0
    %2219 = vmatprep.subr.mxu0 0.0
    %2220 = vmatpush1.msra.mxu0 0.0
    %2221 = vmatprep.subr.mxu0 0.0
    %2222 = vmatpush1.msra.mxu0 0.0
    %2223 = vmatprep.subr.mxu0 0.0
    %2224 = vmatpush1.msra.mxu0 0.0
    %2225 = vmatprep.subr.mxu0 0.0
    %2226 = vmatpush1.msra.mxu0 0.0
    %2227 = vmatprep.subr.mxu0 0.0
    %2228 = vmatpush1.msra.mxu0 0.0
    %2229 = vmatprep.subr.mxu0 0.0
    %2230 = vmatpush1.msra.mxu0 0.0
    %2231 = vmatprep.subr.mxu0 0.0
    %2232 = vmatpush1.msra.mxu0 0.0
    %2233 = vmatprep.subr.mxu0 0.0
    %2234 = vmatpush1.msra.mxu0 0.0
    %2235 = vmatprep.subr.mxu0 0.0
    %2236 = vmatpush1.msra.mxu0 0.0
    %2237 = vmatprep.subr.mxu0 0.0
    %2238 = vmatpush1.msra.mxu0 0.0
    %2239 = vmatprep.subr.mxu0 0.0
    %2240 = vmatpush1.msra.mxu0 0.0
    %2241 = vmatprep.subr.mxu0 0.0
    %2242 = vmatpush1.msra.mxu0 0.0
    %2243 = vmatprep.subr.mxu0 0.0
    %2244 = vmatpush1.msra.mxu0 0.0
    %2245 = vmatprep.subr.mxu0 0.0
    %2246 = vmatpush1.msra.mxu0 0.0
    %2247 = vmatprep.subr.mxu0 0.0
    %2248 = vmatpush1.msra.mxu0 0.0
    %2249 = vmatprep.subr.mxu0 0.0
    %2250 = vmatpush1.msra.mxu0 0.0
    %2251 = vmatprep.subr.mxu0 0.0
    %2252 = vmatpush1.msra.mxu0 0.0
    %2253 = vmatprep.subr.mxu0 0.0
    %2254 = vmatpush1.msra.mxu0 0.0
    %2255 = vmatprep.subr.mxu0 0.0
    %2256 = vmatpush1.msra.mxu0 0.0
    %2257 = vmatprep.subr.mxu0 0.0
    %2258 = vmatpush1.msra.mxu0 0.0
    %2259 = vmatprep.subr.mxu0 0.0
    %2260 = vmatpush1.msra.mxu0 0.0
    %2261 = vmatprep.subr.mxu0 0.0
    %2262 = vmatpush1.msra.mxu0 0.0
    %2263 = vmatprep.subr.mxu0 0.0
    %2264 = vmatpush1.msra.mxu0 0.0
    %2265 = vmatprep.subr.mxu0 0.0
    %2266 = vmatpush1.msra.mxu0 0.0
    %2267 = vmatprep.subr.mxu0 0.0
    %2268 = vmatpush1.msra.mxu0 0.0
    %2269 = vmatprep.subr.mxu0 0.0
    %2270 = vmatpush1.msra.mxu0 0.0
    %2271 = vmatprep.mubr.f32.mxu0 0.0
    %v2272 = vand.u32 %v2067, 4294901760
    %2273 = vmatmul.mubr.f32.gmra.mrb[0].mxu0 %v2272
    %v2274 = vpop.f32.mrb[0].mxu0
    %v2275 = vadd.f32 %v2154, %v2274
    %v2276 = vpop.f32.mrb[0].mxu0
    %2277 = vmatprep.mubr.f32.mxu0 0.0
    %v2278 = vand.u32 %v2070, 4294901760
    %2279 = vmatmul.mubr.f32.gmra.mrb[0].mxu0 %v2278
    %v2280 = vpop.f32.mrb[0].mxu0
    %v2281 = vadd.f32 %v2164, %v2280
    %v2282 = vpop.f32.mrb[0].mxu0
    %2283 = vmatprep.mubr.f32.mxu0 0.0
    %v2284 = vand.u32 %v2073, 4294901760
    %2285 = vmatmul.mubr.f32.gmra.mrb[0].mxu0 %v2284
    %v2286 = vpop.f32.mrb[0].mxu0
    %v2287 = vadd.f32 %v2174, %v2286
    %v2288 = vpop.f32.mrb[0].mxu0
    %2289 = vmatprep.mubr.f32.mxu0 0.0
    %v2290 = vand.u32 %v2076, 4294901760
    %2291 = vmatmul.mubr.f32.gmra.mrb[0].mxu0 %v2290
    %v2292 = vpop.f32.mrb[0].mxu0
    %v2293 = vadd.f32 %v2184, %v2292
    %v2294 = vpop.f32.mrb[0].mxu0
    %2295 = vdwg.mxu0
    %2296 = vmatprep.subr.mxu0 0.0
    %v2297 = vand.u32 %v2054, 4294901760
    %v2298 = vsub.f32 %v2054, %v2297
    %2299 = vmatpush1.msra.mxu0 %v2298
    %2300 = vmatprep.subr.mxu0 0.0
    %v2301 = vand.u32 %v2055, 4294901760
    %v2302 = vsub.f32 %v2055, %v2301
    %2303 = vmatpush1.msra.mxu0 %v2302
    %2304 = vmatprep.subr.mxu0 0.0
    %v2305 = vand.u32 %v2056, 4294901760
    %v2306 = vsub.f32 %v2056, %v2305
    %2307 = vmatpush1.msra.mxu0 %v2306
    %2308 = vmatprep.subr.mxu0 0.0
    %v2309 = vand.u32 %v2057, 4294901760
    %v2310 = vsub.f32 %v2057, %v2309
    %2311 = vmatpush1.msra.mxu0 %v2310
    %2312 = vmatprep.subr.mxu0 0.0
    %2313 = vmatpush1.msra.mxu0 0.0
    %2314 = vmatprep.subr.mxu0 0.0
    %2315 = vmatpush1.msra.mxu0 0.0
    %2316 = vmatprep.subr.mxu0 0.0
    %2317 = vmatpush1.msra.mxu0 0.0
    %2318 = vmatprep.subr.mxu0 0.0
    %2319 = vmatpush1.msra.mxu0 0.0
    %2320 = vmatprep.subr.mxu0 0.0
    %2321 = vmatpush1.msra.mxu0 0.0
    %2322 = vmatprep.subr.mxu0 0.0
    %2323 = vmatpush1.msra.mxu0 0.0
    %2324 = vmatprep.subr.mxu0 0.0
    %2325 = vmatpush1.msra.mxu0 0.0
    %2326 = vmatprep.subr.mxu0 0.0
    %2327 = vmatpush1.msra.mxu0 0.0
    %2328 = vmatprep.subr.mxu0 0.0
    %2329 = vmatpush1.msra.mxu0 0.0
    %2330 = vmatprep.subr.mxu0 0.0
    %2331 = vmatpush1.msra.mxu0 0.0
    %2332 = vmatprep.subr.mxu0 0.0
    %2333 = vmatpush1.msra.mxu0 0.0
    %2334 = vmatprep.subr.mxu0 0.0
    %2335 = vmatpush1.msra.mxu0 0.0
    %2336 = vmatprep.subr.mxu0 0.0
    %2337 = vmatpush1.msra.mxu0 0.0
    %2338 = vmatprep.subr.mxu0 0.0
    %2339 = vmatpush1.msra.mxu0 0.0
    %2340 = vmatprep.subr.mxu0 0.0
    %2341 = vmatpush1.msra.mxu0 0.0
    %2342 = vmatprep.subr.mxu0 0.0
    %2343 = vmatpush1.msra.mxu0 0.0
    %2344 = vmatprep.subr.mxu0 0.0
    %2345 = vmatpush1.msra.mxu0 0.0
    %2346 = vmatprep.subr.mxu0 0.0
    %2347 = vmatpush1.msra.mxu0 0.0
    %2348 = vmatprep.subr.mxu0 0.0
    %2349 = vmatpush1.msra.mxu0 0.0
    %2350 = vmatprep.subr.mxu0 0.0
    %2351 = vmatpush1.msra.mxu0 0.0
    %2352 = vmatprep.subr.mxu0 0.0
    %2353 = vmatpush1.msra.mxu0 0.0
    %2354 = vmatprep.subr.mxu0 0.0
    %2355 = vmatpush1.msra.mxu0 0.0
    %2356 = vmatprep.subr.mxu0 0.0
    %2357 = vmatpush1.msra.mxu0 0.0
    %2358 = vmatprep.subr.mxu0 0.0
    %2359 = vmatpush1.msra.mxu0 0.0
    %2360 = vmatprep.subr.mxu0 0.0
    %2361 = vmatpush1.msra.mxu0 0.0
    %2362 = vmatprep.subr.mxu0 0.0
    %2363 = vmatpush1.msra.mxu0 0.0
    %2364 = vmatprep.subr.mxu0 0.0
    %2365 = vmatpush1.msra.mxu0 0.0
    %2366 = vmatprep.subr.mxu0 0.0
    %2367 = vmatpush1.msra.mxu0 0.0
    %2368 = vmatprep.mubr.f32.mxu0 0.0
    %v2369 = vand.u32 %v2067, 4294901760
    %v2370 = vsub.f32 %v2067, %v2369
    %2371 = vmatmul.mubr.f32.gmra.mrb[0].mxu0 %v2370
    %v2372 = vpop.f32.mrb[0].mxu0
    %v2373 = vadd.f32 %v2275, %v2372
    %v2374 = vpop.f32.mrb[0].mxu0
    %2375 = vmatprep.mubr.f32.mxu0 0.0
    %v2376 = vand.u32 %v2070, 4294901760
    %v2377 = vsub.f32 %v2070, %v2376
    %2378 = vmatmul.mubr.f32.gmra.mrb[0].mxu0 %v2377
    %v2379 = vpop.f32.mrb[0].mxu0
    %v2380 = vadd.f32 %v2281, %v2379
    %v2381 = vpop.f32.mrb[0].mxu0
    %2382 = vmatprep.mubr.f32.mxu0 0.0
    %v2383 = vand.u32 %v2073, 4294901760
    %v2384 = vsub.f32 %v2073, %v2383
    %2385 = vmatmul.mubr.f32.gmra.mrb[0].mxu0 %v2384
    %v2386 = vpop.f32.mrb[0].mxu0
    %v2387 = vadd.f32 %v2287, %v2386
    %v2388 = vpop.f32.mrb[0].mxu0
    %2389 = vmatprep.mubr.f32.mxu0 0.0
    %v2390 = vand.u32 %v2076, 4294901760
    %v2391 = vsub.f32 %v2076, %v2390
    %2392 = vmatmul.mubr.f32.gmra.mrb[0].mxu0 %v2391
    %v2393 = vpop.f32.mrb[0].mxu0
    %v2394 = vadd.f32 %v2293, %v2393
    %v2395 = vpop.f32.mrb[0].mxu0
    %2396 = vdwg.mxu0
    %2397 = vmatprep.subr.mxu0 0.0
    %v2398 = vand.u32 %v2054, 4294901760
    %2399 = vmatpush1.msra.mxu0 %v2398
    %2400 = vmatprep.subr.mxu0 0.0
    %v2401 = vand.u32 %v2055, 4294901760
    %2402 = vmatpush1.msra.mxu0 %v2401
    %2403 = vmatprep.subr.mxu0 0.0
    %v2404 = vand.u32 %v2056, 4294901760
    %2405 = vmatpush1.msra.mxu0 %v2404
    %2406 = vmatprep.subr.mxu0 0.0
    %v2407 = vand.u32 %v2057, 4294901760
    %2408 = vmatpush1.msra.mxu0 %v2407
    %2409 = vmatprep.subr.mxu0 0.0
    %2410 = vmatpush1.msra.mxu0 0.0
    %2411 = vmatprep.subr.mxu0 0.0
    %2412 = vmatpush1.msra.mxu0 0.0
    %2413 = vmatprep.subr.mxu0 0.0
    %2414 = vmatpush1.msra.mxu0 0.0
    %2415 = vmatprep.subr.mxu0 0.0
    %2416 = vmatpush1.msra.mxu0 0.0
    %2417 = vmatprep.subr.mxu0 0.0
    %2418 = vmatpush1.msra.mxu0 0.0
    %2419 = vmatprep.subr.mxu0 0.0
    %2420 = vmatpush1.msra.mxu0 0.0
    %2421 = vmatprep.subr.mxu0 0.0
    %2422 = vmatpush1.msra.mxu0 0.0
    %2423 = vmatprep.subr.mxu0 0.0
    %2424 = vmatpush1.msra.mxu0 0.0
    %2425 = vmatprep.subr.mxu0 0.0
    %2426 = vmatpush1.msra.mxu0 0.0
    %2427 = vmatprep.subr.mxu0 0.0
    %2428 = vmatpush1.msra.mxu0 0.0
    %2429 = vmatprep.subr.mxu0 0.0
    %2430 = vmatpush1.msra.mxu0 0.0
    %2431 = vmatprep.subr.mxu0 0.0
    %2432 = vmatpush1.msra.mxu0 0.0
    %2433 = vmatprep.subr.mxu0 0.0
    %2434 = vmatpush1.msra.mxu0 0.0
    %2435 = vmatprep.subr.mxu0 0.0
    %2436 = vmatpush1.msra.mxu0 0.0
    %2437 = vmatprep.subr.mxu0 0.0
    %2438 = vmatpush1.msra.mxu0 0.0
    %2439 = vmatprep.subr.mxu0 0.0
    %2440 = vmatpush1.msra.mxu0 0.0
    %2441 = vmatprep.subr.mxu0 0.0
    %2442 = vmatpush1.msra.mxu0 0.0
    %2443 = vmatprep.subr.mxu0 0.0
    %2444 = vmatpush1.msra.mxu0 0.0
    %2445 = vmatprep.subr.mxu0 0.0
    %2446 = vmatpush1.msra.mxu0 0.0
    %2447 = vmatprep.subr.mxu0 0.0
    %2448 = vmatpush1.msra.mxu0 0.0
    %2449 = vmatprep.subr.mxu0 0.0
    %2450 = vmatpush1.msra.mxu0 0.0
    %2451 = vmatprep.subr.mxu0 0.0
    %2452 = vmatpush1.msra.mxu0 0.0
    %2453 = vmatprep.subr.mxu0 0.0
    %2454 = vmatpush1.msra.mxu0 0.0
    %2455 = vmatprep.subr.mxu0 0.0
    %2456 = vmatpush1.msra.mxu0 0.0
    %2457 = vmatprep.subr.mxu0 0.0
    %2458 = vmatpush1.msra.mxu0 0.0
    %2459 = vmatprep.subr.mxu0 0.0
    %2460 = vmatpush1.msra.mxu0 0.0
    %2461 = vmatprep.subr.mxu0 0.0
    %2462 = vmatpush1.msra.mxu0 0.0
    %2463 = vmatprep.subr.mxu0 0.0
    %2464 = vmatpush1.msra.mxu0 0.0
    %2465 = vmatprep.mubr.f32.mxu0 0.0
    %v2466 = vand.u32 %v2067, 4294901760
    %v2467 = vsub.f32 %v2067, %v2466
    %v2468 = vand.u32 %v2467, 4294901760
    %2469 = vmatmul.mubr.f32.gmra.mrb[0].mxu0 %v2468
    %v2470 = vpop.f32.mrb[0].mxu0
    %v2471 = vadd.f32 %v2373, %v2470
    %v2472 = vpop.f32.mrb[0].mxu0
    %2473 = vmatprep.mubr.f32.mxu0 0.0
    %v2474 = vand.u32 %v2070, 4294901760
    %v2475 = vsub.f32 %v2070, %v2474
    %v2476 = vand.u32 %v2475, 4294901760
    %2477 = vmatmul.mubr.f32.gmra.mrb[0].mxu0 %v2476
    %v2478 = vpop.f32.mrb[0].mxu0
    %v2479 = vadd.f32 %v2380, %v2478
    %v2480 = vpop.f32.mrb[0].mxu0
    %2481 = vmatprep.mubr.f32.mxu0 0.0
    %v2482 = vand.u32 %v2073, 4294901760
    %v2483 = vsub.f32 %v2073, %v2482
    %v2484 = vand.u32 %v2483, 4294901760
    %2485 = vmatmul.mubr.f32.gmra.mrb[0].mxu0 %v2484
    %v2486 = vpop.f32.mrb[0].mxu0
    %v2487 = vadd.f32 %v2387, %v2486
    %v2488 = vpop.f32.mrb[0].mxu0
    %2489 = vmatprep.mubr.f32.mxu0 0.0
    %v2490 = vand.u32 %v2076, 4294901760
    %v2491 = vsub.f32 %v2076, %v2490
    %v2492 = vand.u32 %v2491, 4294901760
    %2493 = vmatmul.mubr.f32.gmra.mrb[0].mxu0 %v2492
    %v2494 = vpop.f32.mrb[0].mxu0
    %v2495 = vadd.f32 %v2394, %v2494
    %v2496 = vpop.f32.mrb[0].mxu0
    %2497 = vdwg.mxu0
    %2498 = vmatprep.subr.mxu0 0.0
    %v2499 = vand.u32 %v2054, 4294901760
    %v2500 = vsub.f32 %v2054, %v2499
    %v2501 = vand.u32 %v2500, 4294901760
    %2502 = vmatpush1.msra.mxu0 %v2501
    %2503 = vmatprep.subr.mxu0 0.0
    %v2504 = vand.u32 %v2055, 4294901760
    %v2505 = vsub.f32 %v2055, %v2504
    %v2506 = vand.u32 %v2505, 4294901760
    %2507 = vmatpush1.msra.mxu0 %v2506
    %2508 = vmatprep.subr.mxu0 0.0
    %v2509 = vand.u32 %v2056, 4294901760
    %v2510 = vsub.f32 %v2056, %v2509
    %v2511 = vand.u32 %v2510, 4294901760
    %2512 = vmatpush1.msra.mxu0 %v2511
    %2513 = vmatprep.subr.mxu0 0.0
    %v2514 = vand.u32 %v2057, 4294901760
    %v2515 = vsub.f32 %v2057, %v2514
    %v2516 = vand.u32 %v2515, 4294901760
    %2517 = vmatpush1.msra.mxu0 %v2516
    %2518 = vmatprep.subr.mxu0 0.0
    %2519 = vmatpush1.msra.mxu0 0.0
    %2520 = vmatprep.subr.mxu0 0.0
    %2521 = vmatpush1.msra.mxu0 0.0
    %2522 = vmatprep.subr.mxu0 0.0
    %2523 = vmatpush1.msra.mxu0 0.0
    %2524 = vmatprep.subr.mxu0 0.0
    %2525 = vmatpush1.msra.mxu0 0.0
    %2526 = vmatprep.subr.mxu0 0.0
    %2527 = vmatpush1.msra.mxu0 0.0
    %2528 = vmatprep.subr.mxu0 0.0
    %2529 = vmatpush1.msra.mxu0 0.0
    %2530 = vmatprep.subr.mxu0 0.0
    %2531 = vmatpush1.msra.mxu0 0.0
    %2532 = vmatprep.subr.mxu0 0.0
    %2533 = vmatpush1.msra.mxu0 0.0
    %2534 = vmatprep.subr.mxu0 0.0
    %2535 = vmatpush1.msra.mxu0 0.0
    %2536 = vmatprep.subr.mxu0 0.0
    %2537 = vmatpush1.msra.mxu0 0.0
    %2538 = vmatprep.subr.mxu0 0.0
    %2539 = vmatpush1.msra.mxu0 0.0
    %2540 = vmatprep.subr.mxu0 0.0
    %2541 = vmatpush1.msra.mxu0 0.0
    %2542 = vmatprep.subr.mxu0 0.0
    %2543 = vmatpush1.msra.mxu0 0.0
    %2544 = vmatprep.subr.mxu0 0.0
    %2545 = vmatpush1.msra.mxu0 0.0
    %2546 = vmatprep.subr.mxu0 0.0
    %2547 = vmatpush1.msra.mxu0 0.0
    %2548 = vmatprep.subr.mxu0 0.0
    %2549 = vmatpush1.msra.mxu0 0.0
    %2550 = vmatprep.subr.mxu0 0.0
    %2551 = vmatpush1.msra.mxu0 0.0
    %2552 = vmatprep.subr.mxu0 0.0
    %2553 = vmatpush1.msra.mxu0 0.0
    %2554 = vmatprep.subr.mxu0 0.0
    %2555 = vmatpush1.msra.mxu0 0.0
    %2556 = vmatprep.subr.mxu0 0.0
    %2557 = vmatpush1.msra.mxu0 0.0
    %2558 = vmatprep.subr.mxu0 0.0
    %2559 = vmatpush1.msra.mxu0 0.0
    %2560 = vmatprep.subr.mxu0 0.0
    %2561 = vmatpush1.msra.mxu0 0.0
    %2562 = vmatprep.subr.mxu0 0.0
    %2563 = vmatpush1.msra.mxu0 0.0
    %2564 = vmatprep.subr.mxu0 0.0
    %2565 = vmatpush1.msra.mxu0 0.0
    %2566 = vmatprep.subr.mxu0 0.0
    %2567 = vmatpush1.msra.mxu0 0.0
    %2568 = vmatprep.subr.mxu0 0.0
    %2569 = vmatpush1.msra.mxu0 0.0
    %2570 = vmatprep.subr.mxu0 0.0
    %2571 = vmatpush1.msra.mxu0 0.0
    %2572 = vmatprep.subr.mxu0 0.0
    %2573 = vmatpush1.msra.mxu0 0.0
    %2574 = vmatprep.mubr.f32.mxu0 0.0
    %v2575 = vand.u32 %v2067, 4294901760
    %2576 = vmatmul.mubr.f32.gmra.mrb[0].mxu0 %v2575
    %v2577 = vpop.f32.mrb[0].mxu0
    %v2578 = vadd.f32 %v2471, %v2577
    %v2579 = vpop.f32.mrb[0].mxu0
    %2580 = vmatprep.mubr.f32.mxu0 0.0
    %v2581 = vand.u32 %v2070, 4294901760
    %2582 = vmatmul.mubr.f32.gmra.mrb[0].mxu0 %v2581
    %v2583 = vpop.f32.mrb[0].mxu0
    %v2584 = vadd.f32 %v2479, %v2583
    %v2585 = vpop.f32.mrb[0].mxu0
    %2586 = vmatprep.mubr.f32.mxu0 0.0
    %v2587 = vand.u32 %v2073, 4294901760
    %2588 = vmatmul.mubr.f32.gmra.mrb[0].mxu0 %v2587
    %v2589 = vpop.f32.mrb[0].mxu0
    %v2590 = vadd.f32 %v2487, %v2589
    %v2591 = vpop.f32.mrb[0].mxu0
    %2592 = vmatprep.mubr.f32.mxu0 0.0
    %v2593 = vand.u32 %v2076, 4294901760
    %2594 = vmatmul.mubr.f32.gmra.mrb[0].mxu0 %v2593
    %v2595 = vpop.f32.mrb[0].mxu0
    %v2596 = vadd.f32 %v2495, %v2595
    %v2597 = vpop.f32.mrb[0].mxu0
    %2598 = vdwg.mxu0
    %2599 = vmatprep.subr.mxu0 0.0
    %v2600 = vand.u32 %v2054, 4294901760
    %2601 = vmatpush1.msra.mxu0 %v2600
    %2602 = vmatprep.subr.mxu0 0.0
    %v2603 = vand.u32 %v2055, 4294901760
    %2604 = vmatpush1.msra.mxu0 %v2603
    %2605 = vmatprep.subr.mxu0 0.0
    %v2606 = vand.u32 %v2056, 4294901760
    %2607 = vmatpush1.msra.mxu0 %v2606
    %2608 = vmatprep.subr.mxu0 0.0
    %v2609 = vand.u32 %v2057, 4294901760
    %2610 = vmatpush1.msra.mxu0 %v2609
    %2611 = vmatprep.subr.mxu0 0.0
    %2612 = vmatpush1.msra.mxu0 0.0
    %2613 = vmatprep.subr.mxu0 0.0
    %2614 = vmatpush1.msra.mxu0 0.0
    %2615 = vmatprep.subr.mxu0 0.0
    %2616 = vmatpush1.msra.mxu0 0.0
    %2617 = vmatprep.subr.mxu0 0.0
    %2618 = vmatpush1.msra.mxu0 0.0
    %2619 = vmatprep.subr.mxu0 0.0
    %2620 = vmatpush1.msra.mxu0 0.0
    %2621 = vmatprep.subr.mxu0 0.0
    %2622 = vmatpush1.msra.mxu0 0.0
    %2623 = vmatprep.subr.mxu0 0.0
    %2624 = vmatpush1.msra.mxu0 0.0
    %2625 = vmatprep.subr.mxu0 0.0
    %2626 = vmatpush1.msra.mxu0 0.0
    %2627 = vmatprep.subr.mxu0 0.0
    %2628 = vmatpush1.msra.mxu0 0.0
    %2629 = vmatprep.subr.mxu0 0.0
    %2630 = vmatpush1.msra.mxu0 0.0
    %2631 = vmatprep.subr.mxu0 0.0
    %2632 = vmatpush1.msra.mxu0 0.0
    %2633 = vmatprep.subr.mxu0 0.0
    %2634 = vmatpush1.msra.mxu0 0.0
    %2635 = vmatprep.subr.mxu0 0.0
    %2636 = vmatpush1.msra.mxu0 0.0
    %2637 = vmatprep.subr.mxu0 0.0
    %2638 = vmatpush1.msra.mxu0 0.0
    %2639 = vmatprep.subr.mxu0 0.0
    %2640 = vmatpush1.msra.mxu0 0.0
    %2641 = vmatprep.subr.mxu0 0.0
    %2642 = vmatpush1.msra.mxu0 0.0
    %2643 = vmatprep.subr.mxu0 0.0
    %2644 = vmatpush1.msra.mxu0 0.0
    %2645 = vmatprep.subr.mxu0 0.0
    %2646 = vmatpush1.msra.mxu0 0.0
    %2647 = vmatprep.subr.mxu0 0.0
    %2648 = vmatpush1.msra.mxu0 0.0
    %2649 = vmatprep.subr.mxu0 0.0
    %2650 = vmatpush1.msra.mxu0 0.0
    %2651 = vmatprep.subr.mxu0 0.0
    %2652 = vmatpush1.msra.mxu0 0.0
    %2653 = vmatprep.subr.mxu0 0.0
    %2654 = vmatpush1.msra.mxu0 0.0
    %2655 = vmatprep.subr.mxu0 0.0
    %2656 = vmatpush1.msra.mxu0 0.0
    %2657 = vmatprep.subr.mxu0 0.0
    %2658 = vmatpush1.msra.mxu0 0.0
    %2659 = vmatprep.subr.mxu0 0.0
    %2660 = vmatpush1.msra.mxu0 0.0
    %2661 = vmatprep.subr.mxu0 0.0
    %2662 = vmatpush1.msra.mxu0 0.0
    %2663 = vmatprep.subr.mxu0 0.0
    %2664 = vmatpush1.msra.mxu0 0.0
    %2665 = vmatprep.subr.mxu0 0.0
    %2666 = vmatpush1.msra.mxu0 0.0
    %2667 = vmatprep.mubr.f32.mxu0 0.0
    %v2668 = vand.u32 %v2067, 4294901760
    %2669 = vmatmul.mubr.f32.gmra.mrb[0].mxu0 %v2668
    %v2670 = vpop.f32.mrb[0].mxu0
    %v2671 = vadd.f32 %v2578, %v2670
    %v2672 = vpop.f32.mrb[0].mxu0
    %2673 = vmatprep.mubr.f32.mxu0 0.0
    %v2674 = vand.u32 %v2070, 4294901760
    %2675 = vmatmul.mubr.f32.gmra.mrb[0].mxu0 %v2674
    %v2676 = vpop.f32.mrb[0].mxu0
    %v2677 = vadd.f32 %v2584, %v2676
    %v2678 = vpop.f32.mrb[0].mxu0
    %2679 = vmatprep.mubr.f32.mxu0 0.0
    %v2680 = vand.u32 %v2073, 4294901760
    %2681 = vmatmul.mubr.f32.gmra.mrb[0].mxu0 %v2680
    %v2682 = vpop.f32.mrb[0].mxu0
    %v2683 = vadd.f32 %v2590, %v2682
    %v2684 = vpop.f32.mrb[0].mxu0
    %2685 = vmatprep.mubr.f32.mxu0 0.0
    %v2686 = vand.u32 %v2076, 4294901760
    %2687 = vmatmul.mubr.f32.gmra.mrb[0].mxu0 %v2686
    %v2688 = vpop.f32.mrb[0].mxu0
    %v2689 = vadd.f32 %v2596, %v2688
    %v2690 = vpop.f32.mrb[0].mxu0
    %2691 = vdwg.mxu0
    %v2692 = vmul.f32 %v2671, 1.442695
    %v2693 = vpow.pop %v2692
    %v2694 = vmul.f32 %v2677, 1.442695
    %v2695 = vpow.pop %v2694
    %v2696 = vmul.f32 %v2683, 1.442695
    %v2697 = vpow.pop %v2696
    %v2698 = vmul.f32 %v2689, 1.442695
    %v2699 = vpow.pop %v2698
    %v2700 = vmul.f32 %v1444, %v2693
    %v2701 = vmul.f32 %v1445, %v2695
    %v2702 = vmul.f32 %v1446, %v2697
    %v2703 = vmul.f32 %v1447, %v2699
    %2708 = vrot.lane.b32.xlu0 %v2671, 120
    %v2709 = vpop.permute.xlu0 %2708
    %2710 = vrot.lane.b32.xlu0 %v2677, 120
    %v2711 = vpop.permute.xlu0 %2710
    %2712 = vrot.lane.b32.xlu0 %v2683, 120
    %v2713 = vpop.permute.xlu0 %2712
    %2714 = vrot.lane.b32.xlu0 %v2689, 120
    %v2715 = vpop.permute.xlu0 %2714
    %v2720 = vadd.f32 %v2700, %v2709
    %v2721 = vadd.f32 %v2701, %v2711
    %v2722 = vadd.f32 %v2702, %v2713
    %v2723 = vadd.f32 %v2703, %v2715
    %v2724 = vsel %vm174, %v1444, %v2720
    %v2725 = vsel %vm174, %v1445, %v2721
    %v2726 = vsel %vm174, %v1446, %v2722
    %v2727 = vsel %vm174, %v1447, %v2723
    %v2728 = vadd.f32 %v1448, %v2671
    %v2729 = vadd.f32 %v1449, %v2677
    %v2730 = vadd.f32 %v1450, %v2683
    %v2731 = vadd.f32 %v1451, %v2689
    %2732 = vst.msk [vmem:[#allocation2] sm:$0xff] %vm113, %v2724
    %2733 = vst.msk [vmem:[#allocation2 + $0x8] sm:$0xff] %vm113, %v2725
    %2734 = vst.msk [vmem:[#allocation2 + $0x10] sm:$0xff] %vm113, %v2726
    %2735 = vst.msk [vmem:[#allocation2 + $0x18] sm:$0xff] %vm113, %v2727
    %v2736 = vmul.f32 %v2724, %v2724
    %v2737 = vmul.f32 %v2725, %v2725
    %v2738 = vmul.f32 %v2726, %v2726
    %v2739 = vmul.f32 %v2727, %v2727
    %v2740 = vsel %vm113, %v2736, 0.0
    %2741 = vadd.xlane.f32.xlu0 %v2740
    %v2742 = vpop.xlane.xlu0 %2741
    %v2743 = vsel %vm113, %v2737, 0.0
    %2744 = vadd.xlane.f32.xlu0 %v2743
    %v2745 = vpop.xlane.xlu0 %2744
    %v2746 = vsel %vm113, %v2738, 0.0
    %2747 = vadd.xlane.f32.xlu0 %v2746
    %v2748 = vpop.xlane.xlu0 %2747
    %v2749 = vsel %vm113, %v2739, 0.0
    %2750 = vadd.xlane.f32.xlu0 %v2749
    %v2751 = vpop.xlane.xlu0 %2750
    %v2752 = vmul.f32 %v2742, 0.5
    %v2753 = vmul.f32 %v2745, 0.5
    %v2754 = vmul.f32 %v2748, 0.5
    %v2755 = vmul.f32 %v2751, 0.5
    %v2756 = vsub.f32 -7.351508, %v2752
    %v2757 = vsub.f32 -7.351508, %v2753
    %v2758 = vsub.f32 -7.351508, %v2754
    %v2759 = vsub.f32 -7.351508, %v2755
    %v2760 = vsub.f32 %v167, %v2728
    %v2761 = vsub.f32 %v168, %v2729
    %v2762 = vsub.f32 %v169, %v2730
    %v2763 = vsub.f32 %v170, %v2731
    %2768 = vrot.lane.b32.xlu0 %v2760, 113
    %v2769 = vpop.permute.xlu0 %2768
    %2770 = vrot.lane.b32.xlu0 %v2761, 113
    %v2771 = vpop.permute.xlu0 %2770
    %2772 = vrot.lane.b32.xlu0 %v2762, 113
    %v2773 = vpop.permute.xlu0 %2772
    %2774 = vrot.lane.b32.xlu0 %v2763, 113
    %v2775 = vpop.permute.xlu0 %2774
    %vm2780 = vcmask 7168
    %v2781 = vsel %vm2780, %v2756, %v2769
    %v2782 = vsel %vm2780, %v2757, %v2771
    %v2783 = vsel %vm2780, %v2758, %v2773
    %v2784 = vsel %vm2780, %v2759, %v2775
    %vm2785 = vcmask 15360
    %2786 = vst.msk [vmem:[%s8] sm:$0xff] %vm2785, %v2781
    %2787 = vst.msk [vmem:[%s8 + $0x8] sm:$0xff] %vm2785, %v2782
    %2788 = vst.msk [vmem:[%s8 + $0x10] sm:$0xff] %vm2785, %v2783
    %2789 = vst.msk [vmem:[%s8 + $0x18] sm:$0xff] %vm2785, %v2784
    // Predicated region
    $region30: #{tpu_custom_call.1} parent=1 // pred_check
      _
    $region31: #{tpu_custom_call.1} parent=1 // pred_check_branch
      %2791 = sbr.rel (0) target = $region33
    $region32: #{tpu_custom_call.1} parent=1 // pred_region
      %s2793 = ssub.s32 512, 512
      %2794 = vsyncadd [#allocation3], %s2793
      %s2795 = sshll.u32 [#allocation2], 4
      %s2796 = int_to_ptr.vmem [resolvable:$true] %s2795
      %2801 = dma.vmem_to_hbm [thread:$0]  %s2796, 512, %s7, [#allocation3], 128, 128, 8
    $region33: #{tpu_custom_call.1} parent=1 // pred_fallthru
      _
    // Predicated region
    $region34: #{tpu_custom_call.1} parent=1 // pred_check
      _
    $region35: #{tpu_custom_call.1} parent=1 // pred_check_branch
      %2803 = sbr.rel (0) target = $region37
    $region36: #{tpu_custom_call.1} parent=1 // pred_region
      _
    $region37: #{tpu_custom_call.1} parent=1 // pred_fallthru
      _
    // Predicated region
    $region38: #{tpu_custom_call.1} parent=1 // pred_check
      _
    $region39: #{tpu_custom_call.1} parent=1 // pred_check_branch
      %2805 = sbr.rel (0) target = $region41
    $region40: #{tpu_custom_call.1} parent=1 // pred_region
      %2806 = dma.done [#allocation3], 512
    $region41: #{tpu_custom_call.1} parent=1 // pred_fallthru
      _
    // Predicated region
    $region42: #{tpu_custom_call.1} parent=1 // pred_check
      _
    $region43: #{tpu_custom_call.1} parent=1 // pred_check_branch
      %2808 = sbr.rel (0) target = $region45
    $region44: #{tpu_custom_call.1} parent=1 // pred_region
      _
    $region45: #{tpu_custom_call.1} parent=1 // pred_fallthru
      _
    %2809 = vsyncpa [#allocation3], 1

</llo_original>
